<compile_context>
chip_gen: v6e
topology: v6e:2x2x1
jax: 0.10.0
libtpu: 0.0.40
codegen_flags: <defaults>
</compile_context>

<pallas_src>
import jax
import jax.numpy as jnp
from jax.experimental import pallas as pl
from jax.experimental.pallas import tpu as pltpu

_LANES = 128


def _vmem_capacity_bytes():
    """Queried VMEM capacity; conservative (v7x) fallback if unavailable."""
    try:
        info = pltpu.get_tpu_info()
        cap = getattr(info, "vmem_capacity_bytes", None)
        if cap:
            return int(cap)
    except Exception:
        pass
    return 64 * 1024 * 1024


def _make_flat_kernel(bn_blk):
    """stride == 1 path: x block (BN, Cin, TM), spatial positions lane-dense."""

    def kernel(x_ref, scale_ref, shift_ref, w_ref, b_ref, o_ref):
        scale = scale_ref[...]          # (Cin, 1)  f32
        shift = shift_ref[...]          # (Cin, 1)  f32
        w = w_ref[...]                  # (Cout, Cin) bf16, resident
        bias = b_ref[...]               # (Cout, 1) f32
        for b in range(bn_blk):         # static, small
            x = x_ref[b].astype(jnp.float32)                       # (Cin, TM)
            h = jnp.maximum(x * scale + shift, 0.0)                 # BN + ReLU on the VPU (f32)
            y = jnp.dot(w, h.astype(jnp.bfloat16),
                        preferred_element_type=jnp.float32)         # 1x1 conv on the MXU
            o_ref[b] = (y + bias).astype(o_ref.dtype)

    return kernel


def _make_strided_kernel(th, stride):
    """stride > 1 path: x block (Cin, TH*stride, W); H-subsample = static row index,
    W-subsample = 0/1 selection matmul on the MXU (exact on bf16-rounded h)."""

    def kernel(x_ref, scale_ref, shift_ref, sel_ref, w_ref, b_ref, o_ref):
        scale = scale_ref[...]          # (Cin, 1)
        shift = shift_ref[...]          # (Cin, 1)
        sel = sel_ref[...]              # (W, Wo) bf16 0/1, resident
        w = w_ref[...]                  # (Cout, Cin) bf16, resident
        bias = b_ref[...]               # (Cout, 1)
        for r in range(th):             # static unrolled row loop
            xr = x_ref[:, r * stride, :].astype(jnp.float32)        # (Cin, W)
            hr = jnp.maximum(xr * scale + shift, 0.0).astype(jnp.bfloat16)
            hs = jnp.dot(hr, sel, preferred_element_type=jnp.float32)       # (Cin, Wo)
            yr = jnp.dot(w, hs.astype(jnp.bfloat16),
                         preferred_element_type=jnp.float32)                 # (Cout, Wo)
            o_ref[:, r, :] = (yr + bias).astype(o_ref.dtype)

    return kernel


def bn_relu_conv1x1(x_nchw, gamma, beta, mean, var, w_oihw, bias, stride,
                    eps=1e-5, out_dtype=None):
    """BN(eval) -> ReLU -> 1x1 Conv(stride).  x_nchw: (N, Cin, H, W) -> (N, Cout, Ho, Wo)."""
    N, Cin, H, W = x_nchw.shape
    Cout = w_oihw.shape[0]
    out_dtype = x_nchw.dtype if out_dtype is None else out_dtype

    # Fold BN running stats into per-channel scale/shift (inference semantics).
    inv_std = 1.0 / jnp.sqrt(var + eps)
    scale = (gamma * inv_std).reshape(Cin, 1).astype(jnp.float32)
    shift = (beta - mean * gamma * inv_std).reshape(Cin, 1).astype(jnp.float32)
    w2d = w_oihw[:, :, 0, 0].astype(jnp.bfloat16)            # (Cout, Cin)
    b2d = bias.reshape(Cout, 1).astype(jnp.float32)

    in_item = jnp.dtype(x_nchw.dtype).itemsize
    out_item = jnp.dtype(out_dtype).itemsize

    cap = _vmem_capacity_bytes()
    vmem_limit = int(cap * 0.9)
    # Resident params are double-buffered by the pipeline; subtract them from the tile budget.
    param_bytes = 2 * (2 * Cin * 4 + Cout * Cin * 2 + Cout * 4)
    budget = max(4 << 20, int(cap * 0.4) - param_bytes)

    cparams = pltpu.CompilerParams(
        dimension_semantics=("parallel", "parallel"),
        vmem_limit_bytes=vmem_limit,
    )

    if stride == 1:
        # ---- lane-dense flat-spatial path (free contiguous reshape, no extra HBM pass) ----
        Msp = H * W
        x3 = x_nchw.reshape(N, Cin, Msp)

        if Msp >= _LANES:
            bn_blk = 1
            per_lane = (2 * in_item + 6) * Cin + (2 * out_item + 4) * Cout
            tm = (budget // per_lane // _LANES) * _LANES
            tm = max(_LANES, min(tm, 8192, (Msp // _LANES) * _LANES))
            # Keep >= 2 spatial steps when batch alone cannot occupy both v7x TensorCores.
            if N <= 2 and Msp >= 2 * _LANES and pl.cdiv(Msp, tm) < 2:
                tm = min(tm, ((Msp // 2 + _LANES - 1) // _LANES) * _LANES)
        else:
            tm = Msp
            bn_blk = min(N, max(1, (8 * _LANES) // max(Msp, 1)), 16)

        grid = (pl.cdiv(N, bn_blk), pl.cdiv(Msp, tm))
        cost = pl.CostEstimate(
            flops=2 * N * Msp * Cin * Cout + 3 * N * Msp * Cin,
            transcendentals=0,
            bytes_accessed=N * Msp * (Cin * in_item + Cout * out_item)
            + (2 * Cin + Cout) * 4 + Cout * Cin * 2,
        )

        out3 = pl.pallas_call(
            _make_flat_kernel(bn_blk),
            out_shape=jax.ShapeDtypeStruct((N, Cout, Msp), out_dtype),
            grid=grid,
            in_specs=[
                pl.BlockSpec((bn_blk, Cin, tm), lambda n, m: (n, 0, m)),
                pl.BlockSpec((Cin, 1), lambda n, m: (0, 0)),
                pl.BlockSpec((Cin, 1), lambda n, m: (0, 0)),
                pl.BlockSpec((Cout, Cin), lambda n, m: (0, 0)),
                pl.BlockSpec((Cout, 1), lambda n, m: (0, 0)),
            ],
            out_specs=pl.BlockSpec((bn_blk, Cout, tm), lambda n, m: (n, 0, m)),
            compiler_params=cparams,
            cost_estimate=cost,
        )(x3, scale, shift, w2d, b2d)
        return out3.reshape(N, Cout, H, W)

    # ---- stride > 1 path: subsample folded into the kernel (no wrapper HBM pass) ----
    Ho = (H - 1) // stride + 1
    Wo = (W - 1) // stride + 1

    # 0/1 column-selection matrix: picks input columns 0, stride, 2*stride, ... on the MXU.
    sel = (jnp.arange(W)[:, None] == (jnp.arange(Wo) * stride)[None, :]).astype(jnp.bfloat16)

    th = Ho if Ho <= 8 else 8
    if Ho > 8:
        # Grow the output-row tile (multiples of 8) to amortize the per-step overhead,
        # while the input block stays comfortably small.
        while (th * 2 <= min(Ho, 32)
               and Cin * (th * 2) * stride * W * in_item <= (1 << 20)):
            th *= 2
    th_in = min(th * stride, H)            # full H when a single row-block covers everything

    grid = (N, pl.cdiv(Ho, th))
    cost = pl.CostEstimate(
        flops=2 * N * Ho * Wo * Cin * Cout + 2 * N * Ho * Wo * Cin * W + 3 * N * Ho * W * Cin,
        transcendentals=0,
        bytes_accessed=N * Cin * H * W * in_item + N * Cout * Ho * Wo * out_item
        + (2 * Cin + Cout) * 4 + Cout * Cin * 2 + W * Wo * 2,
    )

    out4 = pl.pallas_call(
        _make_strided_kernel(th, stride),
        out_shape=jax.ShapeDtypeStruct((N, Cout, Ho, Wo), out_dtype),
        grid=grid,
        in_specs=[
            pl.BlockSpec((None, Cin, th_in, W), lambda n, r: (n, 0, r, 0)),
            pl.BlockSpec((Cin, 1), lambda n, r: (0, 0)),
            pl.BlockSpec((Cin, 1), lambda n, r: (0, 0)),
            pl.BlockSpec((W, Wo), lambda n, r: (0, 0)),
            pl.BlockSpec((Cout, Cin), lambda n, r: (0, 0)),
            pl.BlockSpec((Cout, 1), lambda n, r: (0, 0)),
        ],
        out_specs=pl.BlockSpec((None, Cout, th, Wo), lambda n, r: (n, 0, r, 0)),
        compiler_params=cparams,
        cost_estimate=cost,
    )(x_nchw, scale, shift, sel, w2d, b2d)
    return out4


def _init_branch_params(key, num_in, num_out):
    """Deterministic init of BatchNorm2d(num_in) + Conv2d(num_in, num_out, 1) params."""
    k = jax.random.split(key, 6)
    return {
        "gamma": 1.0 + 0.1 * jax.random.normal(k[0], (num_in,), jnp.float32),
        "beta": 0.1 * jax.random.normal(k[1], (num_in,), jnp.float32),
        "mean": 0.1 * jax.random.normal(k[2], (num_in,), jnp.float32),
        "var": 0.5 + jax.random.uniform(k[3], (num_in,), jnp.float32),
        "w": 0.2 * jax.random.normal(k[4], (num_out, num_in, 1, 1), jnp.float32),
        "b": 0.1 * jax.random.normal(k[5], (num_out,), jnp.float32),
    }


class SkipLayer:
    """JAX/Pallas equivalent of the PyTorch skipLayer (inference-mode BN)."""

    def __init__(self, num_in, num_out, stride, use_conv, key):
        self.num_in = num_in
        self.num_out = num_out
        self.stride = stride
        self.use_conv = use_conv
        k1, k2 = jax.random.split(key)
        self.s1 = _init_branch_params(k1, num_in, num_out)
        self.s2 = _init_branch_params(k2, num_in, num_out)

    def __call__(self, x_nchw):
        if self.use_conv:
            p = self.s1
        elif (self.num_in == self.num_out) and (self.stride == 1):
            return x_nchw
        else:
            p = self.s2
        return bn_relu_conv1x1(
            x_nchw, p["gamma"], p["beta"], p["mean"], p["var"],
            p["w"], p["b"], self.stride,
        )


def _reference_branch(x, p, stride, eps=1e-5):
    """Pure-JAX f32 reference (mirrors PyTorch BN(eval)+ReLU+Conv1x1 semantics)."""
    xn = (x - p["mean"][None, :, None, None]) / jnp.sqrt(p["var"][None, :, None, None] + eps)
    xn = xn * p["gamma"][None, :, None, None] + p["beta"][None, :, None, None]
    xr = jnp.maximum(xn, 0.0)[:, :, ::stride, ::stride]
    return jnp.einsum("nchw,oc->nohw", xr, p["w"][:, :, 0, 0]) + p["b"][None, :, None, None]


if __name__ == "__main__":
    key = jax.random.PRNGKey(0)
    k_x, k_params = jax.random.split(key)

    # Small shapes consistent with the module: NCHW input.
    N, C_IN, H, W = 2, 4, 16, 16
    C_OUT, STRIDE = 8, 2
    x = jax.random.normal(k_x, (N, C_IN, H, W), jnp.float32)

    # Conv branch (useConv=True -> s1 path), stride 2: exercises the in-kernel subsample path.
    layer = SkipLayer(C_IN, C_OUT, STRIDE, use_conv=True, key=k_params)
    y = jax.block_until_ready(layer(x))
    y_ref = _reference_branch(x, layer.s1, STRIDE)
    assert y.shape == (N, C_OUT, H // STRIDE, W // STRIDE)
    # bf16 MXU operands + f32 accumulation -> slightly looser tolerance (fine at small Cin).
    assert jnp.allclose(y, y_ref, atol=2e-2, rtol=2e-2)

    # s2 branch: useConv=False but numIn != numOut (stride 1, lane-dense flat-spatial path).
    layer_s2 = SkipLayer(C_IN, C_OUT, 1, use_conv=False, key=k_params)
    y2 = jax.block_until_ready(layer_s2(x))
    y2_ref = _reference_branch(x, layer_s2.s2, 1)
    assert y2.shape == (N, C_OUT, H, W)
    assert jnp.allclose(y2, y2_ref, atol=2e-2, rtol=2e-2)

    # Identity branch (numIn == numOut, stride == 1, useConv=False).
    layer_id = SkipLayer(C_IN, C_IN, 1, use_conv=False, key=k_params)
    y_id = jax.block_until_ready(layer_id(x))
    assert jnp.array_equal(y_id, x)

    # Narrowed-HBM-stream path: bf16 in -> bf16 out (same kernel, dtype flows through).
    y_bf16 = jax.block_until_ready(layer(x.astype(jnp.bfloat16)))
    assert y_bf16.dtype == jnp.bfloat16
    assert jnp.allclose(y_bf16.astype(jnp.float32), y_ref, atol=1e-1, rtol=1e-1)

    print("KERNEL_OK")
</pallas_src>

<mosaic_0001>
module attributes {stable_mosaic.version = 11 : i64} {
  func.func @kernel(%arg0: i32, %arg1: i32, %arg2: memref<1x4x16x16xf32, #tpu.memory_space<vmem>>, %arg3: memref<4x1xf32, #tpu.memory_space<vmem>>, %arg4: memref<4x1xf32, #tpu.memory_space<vmem>>, %arg5: memref<16x8xbf16, #tpu.memory_space<vmem>>, %arg6: memref<8x4xbf16, #tpu.memory_space<vmem>>, %arg7: memref<8x1xf32, #tpu.memory_space<vmem>>, %arg8: memref<1x8x8x8xf32, #tpu.memory_space<vmem>>) attributes {dimension_semantics = [#tpu.dimension_semantics<parallel>, #tpu.dimension_semantics<parallel>], iteration_bounds = array<i64: 2, 1>, scalar_prefetch = 0 : i64, scratch_operands = 0 : i64, tpu.core_type = #tpu.core_type<tc>, window_params = [{transform_indices = @transform_0, window_bounds = array<i64: 1, 4, 16, 16>}, {pipeline_mode = #tpu.pipeline_mode<synchronous>, transform_indices = @transform_1, window_bounds = array<i64: 4, 1>}, {pipeline_mode = #tpu.pipeline_mode<synchronous>, transform_indices = @transform_2, window_bounds = array<i64: 4, 1>}, {pipeline_mode = #tpu.pipeline_mode<synchronous>, transform_indices = @transform_3, window_bounds = array<i64: 16, 8>}, {pipeline_mode = #tpu.pipeline_mode<synchronous>, transform_indices = @transform_4, window_bounds = array<i64: 8, 4>}, {pipeline_mode = #tpu.pipeline_mode<synchronous>, transform_indices = @transform_5, window_bounds = array<i64: 8, 1>}, {transform_indices = @transform_6, window_bounds = array<i64: 1, 8, 8, 8>}]} {
    %c0 = arith.constant 0 : index
    %c0_0 = arith.constant 0 : index
    %0 = vector.load %arg3[%c0, %c0_0] : memref<4x1xf32, #tpu.memory_space<vmem>>, vector<4x1xf32>
    %c0_1 = arith.constant 0 : index
    %c0_2 = arith.constant 0 : index
    %1 = vector.load %arg4[%c0_1, %c0_2] : memref<4x1xf32, #tpu.memory_space<vmem>>, vector<4x1xf32>
    %c0_3 = arith.constant 0 : index
    %c0_4 = arith.constant 0 : index
    %2 = vector.load %arg5[%c0_3, %c0_4] : memref<16x8xbf16, #tpu.memory_space<vmem>>, vector<16x8xbf16>
    %c0_5 = arith.constant 0 : index
    %c0_6 = arith.constant 0 : index
    %3 = vector.load %arg6[%c0_5, %c0_6] : memref<8x4xbf16, #tpu.memory_space<vmem>>, vector<8x4xbf16>
    %c0_7 = arith.constant 0 : index
    %c0_8 = arith.constant 0 : index
    %4 = vector.load %arg7[%c0_7, %c0_8] : memref<8x1xf32, #tpu.memory_space<vmem>>, vector<8x1xf32>
    %c0_9 = arith.constant 0 : index
    %c0_10 = arith.constant 0 : index
    %c0_11 = arith.constant 0 : index
    %c0_12 = arith.constant 0 : index
    %5 = vector.load %arg2[%c0_9, %c0_10, %c0_11, %c0_12] : memref<1x4x16x16xf32, #tpu.memory_space<vmem>>, vector<1x4x1x16xf32>
    %6 = vector.shape_cast %5 : vector<1x4x1x16xf32> to vector<4x16xf32>
    %7 = vector.broadcast %0 : vector<4x1xf32> to vector<4x16xf32>
    %8 = arith.mulf %6, %7 : vector<4x16xf32>
    %9 = vector.broadcast %1 : vector<4x1xf32> to vector<4x16xf32>
    %10 = arith.addf %8, %9 : vector<4x16xf32>
    %cst = arith.constant 0.000000e+00 : f32
    %11 = vector.broadcast %cst : f32 to vector<4x16xf32>
    %12 = arith.maximumf %10, %11 : vector<4x16xf32>
    %13 = arith.truncf %12 : vector<4x16xf32> to vector<4x16xbf16>
    %cst_13 = arith.constant dense<0.000000e+00> : vector<4x8xf32>
    %14 = tpu.matmul %13, %2, %cst_13 {dimension_numbers = #tpu.dot_dimension_numbers<[1], [0], [0], [1], [0, 0, 1, 1], [], []>} : vector<4x16xbf16>, vector<16x8xbf16>, vector<4x8xf32> -> vector<4x8xf32>
    %15 = arith.truncf %14 : vector<4x8xf32> to vector<4x8xbf16>
    %cst_14 = arith.constant dense<0.000000e+00> : vector<8x8xf32>
    %16 = tpu.matmul %3, %15, %cst_14 {dimension_numbers = #tpu.dot_dimension_numbers<[1], [0], [0], [1], [0, 0, 1, 1], [], []>} : vector<8x4xbf16>, vector<4x8xbf16>, vector<8x8xf32> -> vector<8x8xf32>
    %17 = vector.broadcast %4 : vector<8x1xf32> to vector<8x8xf32>
    %18 = arith.addf %16, %17 : vector<8x8xf32>
    %c0_15 = arith.constant 0 : index
    %c0_16 = arith.constant 0 : index
    %c0_17 = arith.constant 0 : index
    %c0_18 = arith.constant 0 : index
    %19 = vector.load %arg8[%c0_15, %c0_16, %c0_17, %c0_18] : memref<1x8x8x8xf32, #tpu.memory_space<vmem>>, vector<1x8x1x8xf32>
    %20 = vector.shape_cast %19 : vector<1x8x1x8xf32> to vector<8x8xf32>
    %21 = vector.shape_cast %18 : vector<8x8xf32> to vector<1x8x1x8xf32>
    tpu.vector_store %arg8[%c0_15, %c0_16, %c0_17, %c0_18], %21 {strides = array<i32>} : memref<1x8x8x8xf32, #tpu.memory_space<vmem>>, vector<1x8x1x8xf32>,
    %c0_19 = arith.constant 0 : index
    %c0_20 = arith.constant 0 : index
    %c2 = arith.constant 2 : index
    %c0_21 = arith.constant 0 : index
    %22 = vector.load %arg2[%c0_19, %c0_20, %c2, %c0_21] : memref<1x4x16x16xf32, #tpu.memory_space<vmem>>, vector<1x4x1x16xf32>
    %23 = vector.shape_cast %22 : vector<1x4x1x16xf32> to vector<4x16xf32>
    %24 = vector.broadcast %0 : vector<4x1xf32> to vector<4x16xf32>
    %25 = arith.mulf %23, %24 : vector<4x16xf32>
    %26 = vector.broadcast %1 : vector<4x1xf32> to vector<4x16xf32>
    %27 = arith.addf %25, %26 : vector<4x16xf32>
    %cst_22 = arith.constant 0.000000e+00 : f32
    %28 = vector.broadcast %cst_22 : f32 to vector<4x16xf32>
    %29 = arith.maximumf %27, %28 : vector<4x16xf32>
    %30 = arith.truncf %29 : vector<4x16xf32> to vector<4x16xbf16>
    %cst_23 = arith.constant dense<0.000000e+00> : vector<4x8xf32>
    %31 = tpu.matmul %30, %2, %cst_23 {dimension_numbers = #tpu.dot_dimension_numbers<[1], [0], [0], [1], [0, 0, 1, 1], [], []>} : vector<4x16xbf16>, vector<16x8xbf16>, vector<4x8xf32> -> vector<4x8xf32>
    %32 = arith.truncf %31 : vector<4x8xf32> to vector<4x8xbf16>
    %cst_24 = arith.constant dense<0.000000e+00> : vector<8x8xf32>
    %33 = tpu.matmul %3, %32, %cst_24 {dimension_numbers = #tpu.dot_dimension_numbers<[1], [0], [0], [1], [0, 0, 1, 1], [], []>} : vector<8x4xbf16>, vector<4x8xbf16>, vector<8x8xf32> -> vector<8x8xf32>
    %34 = vector.broadcast %4 : vector<8x1xf32> to vector<8x8xf32>
    %35 = arith.addf %33, %34 : vector<8x8xf32>
    %c0_25 = arith.constant 0 : index
    %c0_26 = arith.constant 0 : index
    %c1 = arith.constant 1 : index
    %c0_27 = arith.constant 0 : index
    %36 = vector.load %arg8[%c0_25, %c0_26, %c1, %c0_27] : memref<1x8x8x8xf32, #tpu.memory_space<vmem>>, vector<1x8x1x8xf32>
    %37 = vector.shape_cast %36 : vector<1x8x1x8xf32> to vector<8x8xf32>
    %38 = vector.shape_cast %35 : vector<8x8xf32> to vector<1x8x1x8xf32>
    tpu.vector_store %arg8[%c0_25, %c0_26, %c1, %c0_27], %38 {strides = array<i32>} : memref<1x8x8x8xf32, #tpu.memory_space<vmem>>, vector<1x8x1x8xf32>,
    %c0_28 = arith.constant 0 : index
    %c0_29 = arith.constant 0 : index
    %c4 = arith.constant 4 : index
    %c0_30 = arith.constant 0 : index
    %39 = vector.load %arg2[%c0_28, %c0_29, %c4, %c0_30] : memref<1x4x16x16xf32, #tpu.memory_space<vmem>>, vector<1x4x1x16xf32>
    %40 = vector.shape_cast %39 : vector<1x4x1x16xf32> to vector<4x16xf32>
    %41 = vector.broadcast %0 : vector<4x1xf32> to vector<4x16xf32>
    %42 = arith.mulf %40, %41 : vector<4x16xf32>
    %43 = vector.broadcast %1 : vector<4x1xf32> to vector<4x16xf32>
    %44 = arith.addf %42, %43 : vector<4x16xf32>
    %cst_31 = arith.constant 0.000000e+00 : f32
    %45 = vector.broadcast %cst_31 : f32 to vector<4x16xf32>
    %46 = arith.maximumf %44, %45 : vector<4x16xf32>
    %47 = arith.truncf %46 : vector<4x16xf32> to vector<4x16xbf16>
    %cst_32 = arith.constant dense<0.000000e+00> : vector<4x8xf32>
    %48 = tpu.matmul %47, %2, %cst_32 {dimension_numbers = #tpu.dot_dimension_numbers<[1], [0], [0], [1], [0, 0, 1, 1], [], []>} : vector<4x16xbf16>, vector<16x8xbf16>, vector<4x8xf32> -> vector<4x8xf32>
    %49 = arith.truncf %48 : vector<4x8xf32> to vector<4x8xbf16>
    %cst_33 = arith.constant dense<0.000000e+00> : vector<8x8xf32>
    %50 = tpu.matmul %3, %49, %cst_33 {dimension_numbers = #tpu.dot_dimension_numbers<[1], [0], [0], [1], [0, 0, 1, 1], [], []>} : vector<8x4xbf16>, vector<4x8xbf16>, vector<8x8xf32> -> vector<8x8xf32>
    %51 = vector.broadcast %4 : vector<8x1xf32> to vector<8x8xf32>
    %52 = arith.addf %50, %51 : vector<8x8xf32>
    %c0_34 = arith.constant 0 : index
    %c0_35 = arith.constant 0 : index
    %c2_36 = arith.constant 2 : index
    %c0_37 = arith.constant 0 : index
    %53 = vector.load %arg8[%c0_34, %c0_35, %c2_36, %c0_37] : memref<1x8x8x8xf32, #tpu.memory_space<vmem>>, vector<1x8x1x8xf32>
    %54 = vector.shape_cast %53 : vector<1x8x1x8xf32> to vector<8x8xf32>
    %55 = vector.shape_cast %52 : vector<8x8xf32> to vector<1x8x1x8xf32>
    tpu.vector_store %arg8[%c0_34, %c0_35, %c2_36, %c0_37], %55 {strides = array<i32>} : memref<1x8x8x8xf32, #tpu.memory_space<vmem>>, vector<1x8x1x8xf32>,
    %c0_38 = arith.constant 0 : index
    %c0_39 = arith.constant 0 : index
    %c6 = arith.constant 6 : index
    %c0_40 = arith.constant 0 : index
    %56 = vector.load %arg2[%c0_38, %c0_39, %c6, %c0_40] : memref<1x4x16x16xf32, #tpu.memory_space<vmem>>, vector<1x4x1x16xf32>
    %57 = vector.shape_cast %56 : vector<1x4x1x16xf32> to vector<4x16xf32>
    %58 = vector.broadcast %0 : vector<4x1xf32> to vector<4x16xf32>
    %59 = arith.mulf %57, %58 : vector<4x16xf32>
    %60 = vector.broadcast %1 : vector<4x1xf32> to vector<4x16xf32>
    %61 = arith.addf %59, %60 : vector<4x16xf32>
    %cst_41 = arith.constant 0.000000e+00 : f32
    %62 = vector.broadcast %cst_41 : f32 to vector<4x16xf32>
    %63 = arith.maximumf %61, %62 : vector<4x16xf32>
    %64 = arith.truncf %63 : vector<4x16xf32> to vector<4x16xbf16>
    %cst_42 = arith.constant dense<0.000000e+00> : vector<4x8xf32>
    %65 = tpu.matmul %64, %2, %cst_42 {dimension_numbers = #tpu.dot_dimension_numbers<[1], [0], [0], [1], [0, 0, 1, 1], [], []>} : vector<4x16xbf16>, vector<16x8xbf16>, vector<4x8xf32> -> vector<4x8xf32>
    %66 = arith.truncf %65 : vector<4x8xf32> to vector<4x8xbf16>
    %cst_43 = arith.constant dense<0.000000e+00> : vector<8x8xf32>
    %67 = tpu.matmul %3, %66, %cst_43 {dimension_numbers = #tpu.dot_dimension_numbers<[1], [0], [0], [1], [0, 0, 1, 1], [], []>} : vector<8x4xbf16>, vector<4x8xbf16>, vector<8x8xf32> -> vector<8x8xf32>
    %68 = vector.broadcast %4 : vector<8x1xf32> to vector<8x8xf32>
    %69 = arith.addf %67, %68 : vector<8x8xf32>
    %c0_44 = arith.constant 0 : index
    %c0_45 = arith.constant 0 : index
    %c3 = arith.constant 3 : index
    %c0_46 = arith.constant 0 : index
    %70 = vector.load %arg8[%c0_44, %c0_45, %c3, %c0_46] : memref<1x8x8x8xf32, #tpu.memory_space<vmem>>, vector<1x8x1x8xf32>
    %71 = vector.shape_cast %70 : vector<1x8x1x8xf32> to vector<8x8xf32>
    %72 = vector.shape_cast %69 : vector<8x8xf32> to vector<1x8x1x8xf32>
    tpu.vector_store %arg8[%c0_44, %c0_45, %c3, %c0_46], %72 {strides = array<i32>} : memref<1x8x8x8xf32, #tpu.memory_space<vmem>>, vector<1x8x1x8xf32>,
    %c0_47 = arith.constant 0 : index
    %c0_48 = arith.constant 0 : index
    %c8 = arith.constant 8 : index
    %c0_49 = arith.constant 0 : index
    %73 = vector.load %arg2[%c0_47, %c0_48, %c8, %c0_49] : memref<1x4x16x16xf32, #tpu.memory_space<vmem>>, vector<1x4x1x16xf32>
    %74 = vector.shape_cast %73 : vector<1x4x1x16xf32> to vector<4x16xf32>
    %75 = vector.broadcast %0 : vector<4x1xf32> to vector<4x16xf32>
    %76 = arith.mulf %74, %75 : vector<4x16xf32>
    %77 = vector.broadcast %1 : vector<4x1xf32> to vector<4x16xf32>
    %78 = arith.addf %76, %77 : vector<4x16xf32>
    %cst_50 = arith.constant 0.000000e+00 : f32
    %79 = vector.broadcast %cst_50 : f32 to vector<4x16xf32>
    %80 = arith.maximumf %78, %79 : vector<4x16xf32>
    %81 = arith.truncf %80 : vector<4x16xf32> to vector<4x16xbf16>
    %cst_51 = arith.constant dense<0.000000e+00> : vector<4x8xf32>
    %82 = tpu.matmul %81, %2, %cst_51 {dimension_numbers = #tpu.dot_dimension_numbers<[1], [0], [0], [1], [0, 0, 1, 1], [], []>} : vector<4x16xbf16>, vector<16x8xbf16>, vector<4x8xf32> -> vector<4x8xf32>
    %83 = arith.truncf %82 : vector<4x8xf32> to vector<4x8xbf16>
    %cst_52 = arith.constant dense<0.000000e+00> : vector<8x8xf32>
    %84 = tpu.matmul %3, %83, %cst_52 {dimension_numbers = #tpu.dot_dimension_numbers<[1], [0], [0], [1], [0, 0, 1, 1], [], []>} : vector<8x4xbf16>, vector<4x8xbf16>, vector<8x8xf32> -> vector<8x8xf32>
    %85 = vector.broadcast %4 : vector<8x1xf32> to vector<8x8xf32>
    %86 = arith.addf %84, %85 : vector<8x8xf32>
    %c0_53 = arith.constant 0 : index
    %c0_54 = arith.constant 0 : index
    %c4_55 = arith.constant 4 : index
    %c0_56 = arith.constant 0 : index
    %87 = vector.load %arg8[%c0_53, %c0_54, %c4_55, %c0_56] : memref<1x8x8x8xf32, #tpu.memory_space<vmem>>, vector<1x8x1x8xf32>
    %88 = vector.shape_cast %87 : vector<1x8x1x8xf32> to vector<8x8xf32>
    %89 = vector.shape_cast %86 : vector<8x8xf32> to vector<1x8x1x8xf32>
    tpu.vector_store %arg8[%c0_53, %c0_54, %c4_55, %c0_56], %89 {strides = array<i32>} : memref<1x8x8x8xf32, #tpu.memory_space<vmem>>, vector<1x8x1x8xf32>,
    %c0_57 = arith.constant 0 : index
    %c0_58 = arith.constant 0 : index
    %c10 = arith.constant 10 : index
    %c0_59 = arith.constant 0 : index
    %90 = vector.load %arg2[%c0_57, %c0_58, %c10, %c0_59] : memref<1x4x16x16xf32, #tpu.memory_space<vmem>>, vector<1x4x1x16xf32>
    %91 = vector.shape_cast %90 : vector<1x4x1x16xf32> to vector<4x16xf32>
    %92 = vector.broadcast %0 : vector<4x1xf32> to vector<4x16xf32>
    %93 = arith.mulf %91, %92 : vector<4x16xf32>
    %94 = vector.broadcast %1 : vector<4x1xf32> to vector<4x16xf32>
    %95 = arith.addf %93, %94 : vector<4x16xf32>
    %cst_60 = arith.constant 0.000000e+00 : f32
    %96 = vector.broadcast %cst_60 : f32 to vector<4x16xf32>
    %97 = arith.maximumf %95, %96 : vector<4x16xf32>
    %98 = arith.truncf %97 : vector<4x16xf32> to vector<4x16xbf16>
    %cst_61 = arith.constant dense<0.000000e+00> : vector<4x8xf32>
    %99 = tpu.matmul %98, %2, %cst_61 {dimension_numbers = #tpu.dot_dimension_numbers<[1], [0], [0], [1], [0, 0, 1, 1], [], []>} : vector<4x16xbf16>, vector<16x8xbf16>, vector<4x8xf32> -> vector<4x8xf32>
    %100 = arith.truncf %99 : vector<4x8xf32> to vector<4x8xbf16>
    %cst_62 = arith.constant dense<0.000000e+00> : vector<8x8xf32>
    %101 = tpu.matmul %3, %100, %cst_62 {dimension_numbers = #tpu.dot_dimension_numbers<[1], [0], [0], [1], [0, 0, 1, 1], [], []>} : vector<8x4xbf16>, vector<4x8xbf16>, vector<8x8xf32> -> vector<8x8xf32>
    %102 = vector.broadcast %4 : vector<8x1xf32> to vector<8x8xf32>
    %103 = arith.addf %101, %102 : vector<8x8xf32>
    %c0_63 = arith.constant 0 : index
    %c0_64 = arith.constant 0 : index
    %c5 = arith.constant 5 : index
    %c0_65 = arith.constant 0 : index
    %104 = vector.load %arg8[%c0_63, %c0_64, %c5, %c0_65] : memref<1x8x8x8xf32, #tpu.memory_space<vmem>>, vector<1x8x1x8xf32>
    %105 = vector.shape_cast %104 : vector<1x8x1x8xf32> to vector<8x8xf32>
    %106 = vector.shape_cast %103 : vector<8x8xf32> to vector<1x8x1x8xf32>
    tpu.vector_store %arg8[%c0_63, %c0_64, %c5, %c0_65], %106 {strides = array<i32>} : memref<1x8x8x8xf32, #tpu.memory_space<vmem>>, vector<1x8x1x8xf32>,
    %c0_66 = arith.constant 0 : index
    %c0_67 = arith.constant 0 : index
    %c12 = arith.constant 12 : index
    %c0_68 = arith.constant 0 : index
    %107 = vector.load %arg2[%c0_66, %c0_67, %c12, %c0_68] : memref<1x4x16x16xf32, #tpu.memory_space<vmem>>, vector<1x4x1x16xf32>
    %108 = vector.shape_cast %107 : vector<1x4x1x16xf32> to vector<4x16xf32>
    %109 = vector.broadcast %0 : vector<4x1xf32> to vector<4x16xf32>
    %110 = arith.mulf %108, %109 : vector<4x16xf32>
    %111 = vector.broadcast %1 : vector<4x1xf32> to vector<4x16xf32>
    %112 = arith.addf %110, %111 : vector<4x16xf32>
    %cst_69 = arith.constant 0.000000e+00 : f32
    %113 = vector.broadcast %cst_69 : f32 to vector<4x16xf32>
    %114 = arith.maximumf %112, %113 : vector<4x16xf32>
    %115 = arith.truncf %114 : vector<4x16xf32> to vector<4x16xbf16>
    %cst_70 = arith.constant dense<0.000000e+00> : vector<4x8xf32>
    %116 = tpu.matmul %115, %2, %cst_70 {dimension_numbers = #tpu.dot_dimension_numbers<[1], [0], [0], [1], [0, 0, 1, 1], [], []>} : vector<4x16xbf16>, vector<16x8xbf16>, vector<4x8xf32> -> vector<4x8xf32>
    %117 = arith.truncf %116 : vector<4x8xf32> to vector<4x8xbf16>
    %cst_71 = arith.constant dense<0.000000e+00> : vector<8x8xf32>
    %118 = tpu.matmul %3, %117, %cst_71 {dimension_numbers = #tpu.dot_dimension_numbers<[1], [0], [0], [1], [0, 0, 1, 1], [], []>} : vector<8x4xbf16>, vector<4x8xbf16>, vector<8x8xf32> -> vector<8x8xf32>
    %119 = vector.broadcast %4 : vector<8x1xf32> to vector<8x8xf32>
    %120 = arith.addf %118, %119 : vector<8x8xf32>
    %c0_72 = arith.constant 0 : index
    %c0_73 = arith.constant 0 : index
    %c6_74 = arith.constant 6 : index
    %c0_75 = arith.constant 0 : index
    %121 = vector.load %arg8[%c0_72, %c0_73, %c6_74, %c0_75] : memref<1x8x8x8xf32, #tpu.memory_space<vmem>>, vector<1x8x1x8xf32>
    %122 = vector.shape_cast %121 : vector<1x8x1x8xf32> to vector<8x8xf32>
    %123 = vector.shape_cast %120 : vector<8x8xf32> to vector<1x8x1x8xf32>
    tpu.vector_store %arg8[%c0_72, %c0_73, %c6_74, %c0_75], %123 {strides = array<i32>} : memref<1x8x8x8xf32, #tpu.memory_space<vmem>>, vector<1x8x1x8xf32>,
    %c0_76 = arith.constant 0 : index
    %c0_77 = arith.constant 0 : index
    %c14 = arith.constant 14 : index
    %c0_78 = arith.constant 0 : index
    %124 = vector.load %arg2[%c0_76, %c0_77, %c14, %c0_78] : memref<1x4x16x16xf32, #tpu.memory_space<vmem>>, vector<1x4x1x16xf32>
    %125 = vector.shape_cast %124 : vector<1x4x1x16xf32> to vector<4x16xf32>
    %126 = vector.broadcast %0 : vector<4x1xf32> to vector<4x16xf32>
    %127 = arith.mulf %125, %126 : vector<4x16xf32>
    %128 = vector.broadcast %1 : vector<4x1xf32> to vector<4x16xf32>
    %129 = arith.addf %127, %128 : vector<4x16xf32>
    %cst_79 = arith.constant 0.000000e+00 : f32
    %130 = vector.broadcast %cst_79 : f32 to vector<4x16xf32>
    %131 = arith.maximumf %129, %130 : vector<4x16xf32>
    %132 = arith.truncf %131 : vector<4x16xf32> to vector<4x16xbf16>
    %cst_80 = arith.constant dense<0.000000e+00> : vector<4x8xf32>
    %133 = tpu.matmul %132, %2, %cst_80 {dimension_numbers = #tpu.dot_dimension_numbers<[1], [0], [0], [1], [0, 0, 1, 1], [], []>} : vector<4x16xbf16>, vector<16x8xbf16>, vector<4x8xf32> -> vector<4x8xf32>
    %134 = arith.truncf %133 : vector<4x8xf32> to vector<4x8xbf16>
    %cst_81 = arith.constant dense<0.000000e+00> : vector<8x8xf32>
    %135 = tpu.matmul %3, %134, %cst_81 {dimension_numbers = #tpu.dot_dimension_numbers<[1], [0], [0], [1], [0, 0, 1, 1], [], []>} : vector<8x4xbf16>, vector<4x8xbf16>, vector<8x8xf32> -> vector<8x8xf32>
    %136 = vector.broadcast %4 : vector<8x1xf32> to vector<8x8xf32>
    %137 = arith.addf %135, %136 : vector<8x8xf32>
    %c0_82 = arith.constant 0 : index
    %c0_83 = arith.constant 0 : index
    %c7 = arith.constant 7 : index
    %c0_84 = arith.constant 0 : index
    %138 = vector.load %arg8[%c0_82, %c0_83, %c7, %c0_84] : memref<1x8x8x8xf32, #tpu.memory_space<vmem>>, vector<1x8x1x8xf32>
    %139 = vector.shape_cast %138 : vector<1x8x1x8xf32> to vector<8x8xf32>
    %140 = vector.shape_cast %137 : vector<8x8xf32> to vector<1x8x1x8xf32>
    tpu.vector_store %arg8[%c0_82, %c0_83, %c7, %c0_84], %140 {strides = array<i32>} : memref<1x8x8x8xf32, #tpu.memory_space<vmem>>, vector<1x8x1x8xf32>,
    return
  }
  func.func @transform_0(%arg0: i32, %arg1: i32) -> (i32, i32, i32, i32) {
    %c0_i32 = arith.constant 0 : i32
    %c0_i32_0 = arith.constant 0 : i32
    %c0_i32_1 = arith.constant 0 : i32
    return %arg0, %c0_i32, %arg1, %c0_i32_0 : i32, i32, i32, i32
  }
  func.func @transform_1(%arg0: i32, %arg1: i32) -> (i32, i32) {
    %c0_i32 = arith.constant 0 : i32
    %c0_i32_0 = arith.constant 0 : i32
    %c0_i32_1 = arith.constant 0 : i32
    return %c0_i32, %c0_i32_0 : i32, i32
  }
  func.func @transform_2(%arg0: i32, %arg1: i32) -> (i32, i32) {
    %c0_i32 = arith.constant 0 : i32
    %c0_i32_0 = arith.constant 0 : i32
    %c0_i32_1 = arith.constant 0 : i32
    return %c0_i32, %c0_i32_0 : i32, i32
  }
  func.func @transform_3(%arg0: i32, %arg1: i32) -> (i32, i32) {
    %c0_i32 = arith.constant 0 : i32
    %c0_i32_0 = arith.constant 0 : i32
    %c0_i32_1 = arith.constant 0 : i32
    return %c0_i32, %c0_i32_0 : i32, i32
  }
  func.func @transform_4(%arg0: i32, %arg1: i32) -> (i32, i32) {
    %c0_i32 = arith.constant 0 : i32
    %c0_i32_0 = arith.constant 0 : i32
    %c0_i32_1 = arith.constant 0 : i32
    return %c0_i32, %c0_i32_0 : i32, i32
  }
  func.func @transform_5(%arg0: i32, %arg1: i32) -> (i32, i32) {
    %c0_i32 = arith.constant 0 : i32
    %c0_i32_0 = arith.constant 0 : i32
    %c0_i32_1 = arith.constant 0 : i32
    return %c0_i32, %c0_i32_0 : i32, i32
  }
  func.func @transform_6(%arg0: i32, %arg1: i32) -> (i32, i32, i32, i32) {
    %c0_i32 = arith.constant 0 : i32
    %c0_i32_0 = arith.constant 0 : i32
    %c0_i32_1 = arith.constant 0 : i32
    return %arg0, %c0_i32, %arg1, %c0_i32_0 : i32, i32, i32, i32
  }
}

</mosaic_0001>

<llo_original>
// kernel: tpu_custom_call.1
$region0: #{tpu_custom_call.1}
  #allocation0 [shape = 'u32[]', space=smem, size = 0x4, offset = 0x4, fixed_abs, tag = 'smem constant byte address 0x4 - core index']
  #allocation1 [shape = 'u32[144,128]{1,0:T(1,128)}', space=vmem, size = 0x12000, scoped, tag = 'internal scratch']
  %s0 = inlined_call_operand.hbm [shape: f32[2,4,16,16], index: 0, kind: input, shape index: {}]
  %s1 = inlined_call_operand.vmem [shape: f32[4,1], index: 1, kind: input, shape index: {}]
  %s2 = inlined_call_operand.vmem [shape: f32[4,1], index: 2, kind: input, shape index: {}]
  %s3 = inlined_call_operand.vmem [shape: bf16[16,8], index: 3, kind: input, shape index: {}]
  %s4 = inlined_call_operand.vmem [shape: bf16[8,4], index: 4, kind: input, shape index: {}]
  %s5 = inlined_call_operand.vmem [shape: f32[8,1], index: 5, kind: input, shape index: {}]
  %s6 = inlined_call_operand.hbm [shape: f32[2,8,8,8], index: 6, kind: output, shape index: {}]
  %s7 = sld [smem:[#allocation0]]
  $region61: #{tpu_custom_call.1} parent=0
    _
  %s9 = ssub.s32 1, %s7
  %s10 = scalar_select 0, %s9, %s7
  $region1: #{tpu_custom_call.1} parent=0
    #allocation2 [shape = 'u8[65536]{0}', space=vmem, size = 0x10000, scoped, tag = 'input window, operand 0']
    #allocation3 [shape = 's32[2]{0}', space=sflag, size = 0x8, scoped, tag = 'scoped memory for tpu_custom_call.1']
    #allocation4 [shape = 's32[2]{0}', space=sflag, size = 0x8, scoped, tag = 'scoped memory for tpu_custom_call.1']
    #allocation5 [shape = 'u8[65536]{0}', space=vmem, size = 0x10000, scoped, tag = 'output window, operand 0']
    %11 = vsyncpa [#allocation3], 0
    %s12 = scalar_lea.sflag [#allocation3], 1
    %13 = vsyncpa %s12, 0
    %14 = vsyncpa [#allocation4], 0
    %s15 = scalar_lea.sflag [#allocation4], 1
    %16 = vsyncpa %s15, 0
    loop: start=0, step=1, limit=4
    $region2: #{tpu_custom_call.1} parent=1 // loop_pre_header
      _
    $region3: #{tpu_custom_call.1} parent=1 // loop_header
      %s18 = sphi 0, %s22
      %p19 = scmp.ge.s32.totalorder %s18, 4
      %s25 = sphi 0, %s37
      %s26 = sphi 0, %s33
      %s27 = sphi 0, %s25
      %s28 = sphi 0, %s26
      %s29 = sphi 0, %s27
      %s30 = sphi 0, %s28
      %s42 = sphi 0, %s44
      %s45 = sphi 0, %s42
      %s46 = sphi 0, %s45
      %s62 = sphi 0, %s46
      %s66 = sphi 0, %s66
      %s68 = sphi 0, %s66
      %s69 = sphi 0, %s68
      %s83 = sphi 0, %s69
      %s87 = sphi 0, %s87
      %s89 = sphi 0, %s87
      %s90 = sphi 0, %s89
      %s104 = sphi 0, %s90
      %s108 = sphi 0, %s108
      %s110 = sphi 0, %s108
      %s111 = sphi 0, %s110
      %s125 = sphi 0, %s111
      %s129 = sphi 0, %s129
      %s131 = sphi 0, %s129
      %s132 = sphi 0, %s131
      %s146 = sphi 0, %s132
      %s150 = sphi 0, %s150
      %s152 = sphi 0, %s150
      %s153 = sphi 0, %s152
      %s167 = sphi 0, %s153
      %s175 = sphi 0, %s177
      %s178 = sphi 0, %s175
      %s179 = sphi 0, %s178
      %s195 = sphi 0, %s179
    $region4: #{tpu_custom_call.1} parent=1 // loop_header_branch
      %21 = sbr.rel (%p19) target = $region8
    $region5: #{tpu_custom_call.1} parent=1 // loop_body
      %s23 = ssub.s32 %s18, 1
      %s24 = ssub.s32 %s18, 2
      %s31 = sadd.s32 1, %s26
      %p32 = scmp.ge.s32.totalorder %s31, 1
      %s33 = scalar_select %p32, 0, %s31
      %s34 = sadd.s32 1, %s25
      %s35 = scalar_select %p32, %s34, %s25
      %p36 = scmp.ge.s32.totalorder %s35, 2
      %s37 = scalar_select %p36, 0, %s35
      %s38 = ssub.s32 %s25, %s37
      %s39 = ssub.s32 %s26, %s33
      %s40 = sor.u32 %s38, %s39
      %p41 = scmp.eq.s32.totalorder %s40, 0
      %s43 = sadd.s32 %s42, 1
      %s44 = scalar_select %p41, %s42, %s43
      %p47 = pneg %p41
      %p48 = scmp.eq.s32.totalorder %s18, 1
      %p49 = por %p47, %p48
      %p50 = scmp.ne.s32.totalorder %s42, %s45
      %p51 = scmp.eq.s32.totalorder %s18, 0
      %p52 = por %p50, %p51
      %p53 = scmp.ne.s32.totalorder %s42, %s45
      %p54 = scmp.eq.s32.totalorder %s23, 1
      %p55 = por %p53, %p54
      %p56 = scmp.ne.s32.totalorder %s45, %s46
      %p57 = scmp.eq.s32.totalorder %s23, 0
      %p58 = por %p56, %p57
      %p59 = scmp.ne.s32.totalorder %s45, %s46
      %p60 = scmp.eq.s32.totalorder %s24, 1
      %p61 = por %p59, %p60
      %p63 = scmp.ne.s32.totalorder %s46, %s62
      %p64 = scmp.eq.s32.totalorder %s24, 0
      %p65 = por %p63, %p64
      %s67 = sadd.s32 %s66, 1
      %p70 = scmp.eq.s32.totalorder %s18, 1
      %p71 = scmp.ne.s32.totalorder %s66, %s68
      %p72 = scmp.eq.s32.totalorder %s18, 0
      %p73 = por %p71, %p72
      %p74 = scmp.ne.s32.totalorder %s66, %s68
      %p75 = scmp.eq.s32.totalorder %s23, 1
      %p76 = por %p74, %p75
      %p77 = scmp.ne.s32.totalorder %s68, %s69
      %p78 = scmp.eq.s32.totalorder %s23, 0
      %p79 = por %p77, %p78
      %p80 = scmp.ne.s32.totalorder %s68, %s69
      %p81 = scmp.eq.s32.totalorder %s24, 1
      %p82 = por %p80, %p81
      %p84 = scmp.ne.s32.totalorder %s69, %s83
      %p85 = scmp.eq.s32.totalorder %s24, 0
      %p86 = por %p84, %p85
      %s88 = sadd.s32 %s87, 1
      %p91 = scmp.eq.s32.totalorder %s18, 1
      %p92 = scmp.ne.s32.totalorder %s87, %s89
      %p93 = scmp.eq.s32.totalorder %s18, 0
      %p94 = por %p92, %p93
      %p95 = scmp.ne.s32.totalorder %s87, %s89
      %p96 = scmp.eq.s32.totalorder %s23, 1
      %p97 = por %p95, %p96
      %p98 = scmp.ne.s32.totalorder %s89, %s90
      %p99 = scmp.eq.s32.totalorder %s23, 0
      %p100 = por %p98, %p99
      %p101 = scmp.ne.s32.totalorder %s89, %s90
      %p102 = scmp.eq.s32.totalorder %s24, 1
      %p103 = por %p101, %p102
      %p105 = scmp.ne.s32.totalorder %s90, %s104
      %p106 = scmp.eq.s32.totalorder %s24, 0
      %p107 = por %p105, %p106
      %s109 = sadd.s32 %s108, 1
      %p112 = scmp.eq.s32.totalorder %s18, 1
      %p113 = scmp.ne.s32.totalorder %s108, %s110
      %p114 = scmp.eq.s32.totalorder %s18, 0
      %p115 = por %p113, %p114
      %p116 = scmp.ne.s32.totalorder %s108, %s110
      %p117 = scmp.eq.s32.totalorder %s23, 1
      %p118 = por %p116, %p117
      %p119 = scmp.ne.s32.totalorder %s110, %s111
      %p120 = scmp.eq.s32.totalorder %s23, 0
      %p121 = por %p119, %p120
      %p122 = scmp.ne.s32.totalorder %s110, %s111
      %p123 = scmp.eq.s32.totalorder %s24, 1
      %p124 = por %p122, %p123
      %p126 = scmp.ne.s32.totalorder %s111, %s125
      %p127 = scmp.eq.s32.totalorder %s24, 0
      %p128 = por %p126, %p127
      %s130 = sadd.s32 %s129, 1
      %p133 = scmp.eq.s32.totalorder %s18, 1
      %p134 = scmp.ne.s32.totalorder %s129, %s131
      %p135 = scmp.eq.s32.totalorder %s18, 0
      %p136 = por %p134, %p135
      %p137 = scmp.ne.s32.totalorder %s129, %s131
      %p138 = scmp.eq.s32.totalorder %s23, 1
      %p139 = por %p137, %p138
      %p140 = scmp.ne.s32.totalorder %s131, %s132
      %p141 = scmp.eq.s32.totalorder %s23, 0
      %p142 = por %p140, %p141
      %p143 = scmp.ne.s32.totalorder %s131, %s132
      %p144 = scmp.eq.s32.totalorder %s24, 1
      %p145 = por %p143, %p144
      %p147 = scmp.ne.s32.totalorder %s132, %s146
      %p148 = scmp.eq.s32.totalorder %s24, 0
      %p149 = por %p147, %p148
      %s151 = sadd.s32 %s150, 1
      %p154 = scmp.eq.s32.totalorder %s18, 1
      %p155 = scmp.ne.s32.totalorder %s150, %s152
      %p156 = scmp.eq.s32.totalorder %s18, 0
      %p157 = por %p155, %p156
      %p158 = scmp.ne.s32.totalorder %s150, %s152
      %p159 = scmp.eq.s32.totalorder %s23, 1
      %p160 = por %p158, %p159
      %p161 = scmp.ne.s32.totalorder %s152, %s153
      %p162 = scmp.eq.s32.totalorder %s23, 0
      %p163 = por %p161, %p162
      %p164 = scmp.ne.s32.totalorder %s152, %s153
      %p165 = scmp.eq.s32.totalorder %s24, 1
      %p166 = por %p164, %p165
      %p168 = scmp.ne.s32.totalorder %s153, %s167
      %p169 = scmp.eq.s32.totalorder %s24, 0
      %p170 = por %p168, %p169
      %s171 = ssub.s32 %s25, %s37
      %s172 = ssub.s32 %s26, %s33
      %s173 = sor.u32 %s171, %s172
      %p174 = scmp.eq.s32.totalorder %s173, 0
      %s176 = sadd.s32 %s175, 1
      %s177 = scalar_select %p174, %s175, %s176
      %p180 = pneg %p174
      %p181 = scmp.eq.s32.totalorder %s18, 1
      %p182 = por %p180, %p181
      %p183 = scmp.ne.s32.totalorder %s175, %s178
      %p184 = scmp.eq.s32.totalorder %s18, 0
      %p185 = por %p183, %p184
      %p186 = scmp.ne.s32.totalorder %s175, %s178
      %p187 = scmp.eq.s32.totalorder %s23, 1
      %p188 = por %p186, %p187
      %p189 = scmp.ne.s32.totalorder %s178, %s179
      %p190 = scmp.eq.s32.totalorder %s23, 0
      %p191 = por %p189, %p190
      %p192 = scmp.ne.s32.totalorder %s178, %s179
      %p193 = scmp.eq.s32.totalorder %s24, 1
      %p194 = por %p192, %p193
      %p196 = scmp.ne.s32.totalorder %s179, %s195
      %p197 = scmp.eq.s32.totalorder %s24, 0
      %p198 = por %p196, %p197
      %p199 = scmp.le.s32.totalorder 1, %s18
      %p200 = scmp.lt.s32.totalorder %s18, 3
      %p201 = pnand %p199, %p200
      %p202 = pneg %p201
      // Predicated region
      $region9: #{tpu_custom_call.1} parent=5 // pred_check
        _
      $region10: #{tpu_custom_call.1} parent=5 // pred_check_branch
        %204 = sbr.rel (%p201) target = $region12
      $region11: #{tpu_custom_call.1} parent=5 // pred_region
        %s205 = ssub.s32 %s18, 1
        // Predicated region
        $region13: #{tpu_custom_call.1} parent=11 // pred_check
          %p206 = pneg %p79
        $region14: #{tpu_custom_call.1} parent=11 // pred_check_branch
          %208 = sbr.rel (%p206) target = $region16
        $region15: #{tpu_custom_call.1} parent=11 // pred_region
          _
        $region16: #{tpu_custom_call.1} parent=11 // pred_fallthru
          _
        // Predicated region
        $region17: #{tpu_custom_call.1} parent=11 // pred_check
          %p209 = pneg %p100
        $region18: #{tpu_custom_call.1} parent=11 // pred_check_branch
          %211 = sbr.rel (%p209) target = $region20
        $region19: #{tpu_custom_call.1} parent=11 // pred_region
          _
        $region20: #{tpu_custom_call.1} parent=11 // pred_fallthru
          _
        // Predicated region
        $region21: #{tpu_custom_call.1} parent=11 // pred_check
          %p212 = pneg %p121
        $region22: #{tpu_custom_call.1} parent=11 // pred_check_branch
          %214 = sbr.rel (%p212) target = $region24
        $region23: #{tpu_custom_call.1} parent=11 // pred_region
          _
        $region24: #{tpu_custom_call.1} parent=11 // pred_fallthru
          _
        // Predicated region
        $region25: #{tpu_custom_call.1} parent=11 // pred_check
          %p215 = pneg %p142
        $region26: #{tpu_custom_call.1} parent=11 // pred_check_branch
          %217 = sbr.rel (%p215) target = $region28
        $region27: #{tpu_custom_call.1} parent=11 // pred_region
          _
        $region28: #{tpu_custom_call.1} parent=11 // pred_fallthru
          _
        // Predicated region
        $region29: #{tpu_custom_call.1} parent=11 // pred_check
          %p218 = pneg %p163
        $region30: #{tpu_custom_call.1} parent=11 // pred_check_branch
          %220 = sbr.rel (%p218) target = $region32
        $region31: #{tpu_custom_call.1} parent=11 // pred_region
          _
        $region32: #{tpu_custom_call.1} parent=11 // pred_fallthru
          _
      $region12: #{tpu_custom_call.1} parent=5 // pred_fallthru
        _
      %p221 = scmp.lt.s32.totalorder %s18, 2
      // Predicated region
      $region33: #{tpu_custom_call.1} parent=5 // pred_check
        %p222 = pneg %p221
      $region34: #{tpu_custom_call.1} parent=5 // pred_check_branch
        %224 = sbr.rel (%p222) target = $region36
      $region35: #{tpu_custom_call.1} parent=5 // pred_region
        // Predicated region
        $region37: #{tpu_custom_call.1} parent=35 // pred_check
          %p225 = pneg %p52
        $region38: #{tpu_custom_call.1} parent=35 // pred_check_branch
          %227 = sbr.rel (%p225) target = $region40
        $region39: #{tpu_custom_call.1} parent=35 // pred_region
          %s228 = sand.u32 %s42, 1
          %s229 = scalar_lea.sflag [#allocation3], %s228
          %s230 = sand.u32 %s42, 1
          %s231 = smul.addr %s230, 64
          %s232 = scalar_lea.vmem [#allocation2], %s231
          %s233 = smul.u32 2, %s26
          %s235 = ssub.s32 1024, 1024
          %236 = vsyncadd %s229, %s235
          %s237 = smul.addr %s25, 8
          %s238 = sadd.s32 %s233, %s237
          %s239 = smul.addr %s238, 128
          %s240 = scalar_lea.hbm %s0, %s239
          %s241 = sshll.u32 %s232, 4
          %s242 = int_to_ptr.vmem [resolvable:$true] %s241
          %247 = dma.hbm_to_vmem [thread:$0]  %s240, 1024, %s242, %s229, 128, 128, 8
        $region40: #{tpu_custom_call.1} parent=35 // pred_fallthru
          _
      $region36: #{tpu_custom_call.1} parent=5 // pred_fallthru
        _
      %p248 = scmp.le.s32.totalorder 1, %s18
      %p249 = scmp.lt.s32.totalorder %s18, 3
      %p250 = pnand %p248, %p249
      %p251 = pneg %p250
      // Predicated region
      $region41: #{tpu_custom_call.1} parent=5 // pred_check
        _
      $region42: #{tpu_custom_call.1} parent=5 // pred_check_branch
        %253 = sbr.rel (%p250) target = $region44
      $region43: #{tpu_custom_call.1} parent=5 // pred_region
        %s254 = ssub.s32 %s18, 1
        %s255 = sand.u32 %s45, 1
        %s256 = scalar_lea.sflag [#allocation3], %s255
        %s257 = sand.u32 %s45, 1
        %s258 = smul.addr %s257, 64
        %s259 = scalar_lea.vmem [#allocation2], %s258
        // Predicated region
        $region45: #{tpu_custom_call.1} parent=43 // pred_check
          %p260 = pneg %p58
        $region46: #{tpu_custom_call.1} parent=43 // pred_check_branch
          %262 = sbr.rel (%p260) target = $region48
        $region47: #{tpu_custom_call.1} parent=43 // pred_region
          %263 = dma.done %s256, 1024
        $region48: #{tpu_custom_call.1} parent=43 // pred_fallthru
          _
        %s264 = sand.u32 %s45, 1
        %s265 = scalar_lea.sflag [#allocation3], %s264
        %s266 = sand.u32 %s45, 1
        %s267 = smul.addr %s266, 64
        %s268 = scalar_lea.vmem [#allocation2], %s267
        %p269 = pneg %p58
        %p270 = pneg %p55
        %p271 = pneg %p79
        %p272 = pneg %p76
        %p273 = pneg %p100
        %p274 = pneg %p97
        %p275 = pneg %p121
        %p276 = pneg %p118
        %p277 = pneg %p142
        %p278 = pneg %p139
        %p279 = pneg %p163
        %p280 = pneg %p160
        %p281 = pneg %p191
        %p282 = pneg %p188
        %s283 = sand.u32 %s178, 1
        %s284 = scalar_lea.sflag [#allocation4], %s283
        %s285 = sand.u32 %s178, 1
        %s286 = smul.addr %s285, 64
        %s287 = scalar_lea.vmem [#allocation5], %s286
        %s288 = smul.u32 2, %s28
        %v290 = vld [vmem:[%s1] sm:$0xf]
        %v291 = vld [vmem:[%s2] sm:$0xf]
        %v292 = vld [vmem:[%s3] sm:$0xf]
        %v293 = vld [vmem:[%s3 + $0x4] sm:$0xf]
        %v294 = vld [vmem:[%s4] sm:$0xf]
        %v295 = vld [vmem:[%s5] sm:$0xff]
        %v296 = vld [vmem:[%s259] sm:$0x1]
        %v297 = vld [vmem:[%s259 + $0x10] sm:$0x1]
        %v298 = vld [vmem:[%s259 + $0x20] sm:$0x1]
        %v299 = vld [vmem:[%s259 + $0x30] sm:$0x1]
        %301 = vset.pattern.permute.xlu0 0
        %302 = vperm.xlu0 %301, %v290
        %v303 = vpop.permute.xlu0 %302
        %v304 = vrot.slane %v303, 1
        %v305 = vrot.slane %v303, 2
        %v306 = vrot.slane %v303, 3
        %v311 = vmul.f32 %v296, %v303
        %v312 = vmul.f32 %v297, %v304
        %v313 = vmul.f32 %v298, %v305
        %v314 = vmul.f32 %v299, %v306
        %316 = vset.pattern.permute.xlu0 0
        %317 = vperm.xlu0 %316, %v291
        %v318 = vpop.permute.xlu0 %317
        %v319 = vrot.slane %v318, 1
        %v320 = vrot.slane %v318, 2
        %v321 = vrot.slane %v318, 3
        %v326 = vadd.f32 %v311, %v318
        %v327 = vadd.f32 %v312, %v319
        %v328 = vadd.f32 %v313, %v320
        %v329 = vadd.f32 %v314, %v321
        %v330 = vmax.f32 %v326, 0.0
        %v331 = vmax.f32 %v327, 0.0
        %v332 = vmax.f32 %v328, 0.0
        %v333 = vmax.f32 %v329, 0.0
        %v334 = vpack.c.bf16 %v330, %v330
        %v335 = vpack.c.bf16 %v331, %v331
        %v336 = vpack.c.bf16 %v332, %v332
        %v337 = vpack.c.bf16 %v333, %v333
        %v342 = vunpack.c.l.b16 %v334
        %v343 = vunpack.c.l.b16 %v335
        %v344 = vunpack.c.l.b16 %v336
        %v345 = vunpack.c.l.b16 %v337
        %v346 = vrot.slane %v343, 7
        %vm347 = vcmask 1041409
        %v348 = vsel %vm347, %v346, %v342
        %v349 = vrot.slane %v344, 6
        %vm350 = vcmask 1042434
        %v351 = vsel %vm350, %v349, %v348
        %v352 = vrot.slane %v345, 5
        %vm353 = vcmask 1043459
        %v354 = vsel %vm353, %v352, %v351
        %v355 = vpack.c.b16 %v354, %v354
        %v358 = vunpack.c.l.b16 %v292
        %v359 = vunpack.c.l.b16 %v293
        %v360 = vpack.c.b16 %v359, %v358
        %vm362 = vcmask 130048
        %v364 = vsel %vm362, %v355, 0
        %366 = vmatprep.subr.bf16.mxu0 0
        %367 = vmatpush1.bf16.msra.mxu0 0
        %368 = vmatprep.subr.bf16.mxu0 0
        %369 = vmatpush1.bf16.msra.mxu0 0
        %370 = vmatprep.subr.bf16.mxu0 0
        %371 = vmatpush1.bf16.msra.mxu0 0
        %372 = vmatprep.subr.bf16.mxu0 0
        %373 = vmatpush1.bf16.msra.mxu0 0
        %374 = vmatprep.subr.bf16.mxu0 0
        %375 = vmatpush1.bf16.msra.mxu0 0
        %376 = vmatprep.subr.bf16.mxu0 0
        %377 = vmatpush1.bf16.msra.mxu0 0
        %378 = vmatprep.subr.bf16.mxu0 0
        %379 = vmatpush1.bf16.msra.mxu0 0
        %380 = vmatprep.subr.bf16.mxu0 0
        %381 = vmatpush1.bf16.msra.mxu0 %v360
        %382 = vmatprep.subr.bf16.mxu0 0
        %383 = vmatpush2.bf16.msra.mxu0 0
        %384 = vmatprep.subr.bf16.mxu0 0
        %385 = vmatpush2.bf16.msra.mxu0 0
        %386 = vmatprep.subr.bf16.mxu0 0
        %387 = vmatpush2.bf16.msra.mxu0 0
        %388 = vmatprep.subr.bf16.mxu0 0
        %389 = vmatpush2.bf16.msra.mxu0 0
        %390 = vmatprep.subr.bf16.mxu0 0
        %391 = vmatpush2.bf16.msra.mxu0 0
        %392 = vmatprep.subr.bf16.mxu0 0
        %393 = vmatpush2.bf16.msra.mxu0 0
        %394 = vmatprep.subr.bf16.mxu0 0
        %395 = vmatpush2.bf16.msra.mxu0 0
        %396 = vmatprep.subr.bf16.mxu0 0
        %397 = vmatpush2.bf16.msra.mxu0 0
        %398 = vmatprep.mubr.bf16.mxu0 0
        %399 = vmatmul.mubr.bf16.gmra.mxu0 %v364
        %v400 = vpop.f32.mrf.mxu0
        %v401 = vadd.f32 0.0, %v400
        %v402 = vpop.f32.mrf.mxu0
        %v403 = vpop.f32.mrf.mxu0
        %v404 = vpop.f32.mrf.mxu0
        %405 = vdwg.mxu0
        %v406 = vpack.c.bf16 %v401, %v401
        %408 = vset.pattern.permute.xlu0 0
        %409 = vperm.xlu0 %408, %v295
        %v410 = vpop.permute.xlu0 %409
        %vm412 = vcmask 31744
        %v414 = vsel %vm412, %v294, 0
        %vm416 = vcmask 1041408
        %v418 = vsel %vm416, %v406, 0
        %420 = vmatprep.subr.bf16.mxu0 0
        %421 = vmatpush1.bf16.msra.mxu0 0
        %422 = vmatprep.subr.bf16.mxu0 0
        %423 = vmatpush1.bf16.msra.mxu0 0
        %424 = vmatprep.subr.bf16.mxu0 0
        %425 = vmatpush1.bf16.msra.mxu0 0
        %426 = vmatprep.subr.bf16.mxu0 0
        %427 = vmatpush1.bf16.msra.mxu0 0
        %428 = vmatprep.subr.bf16.mxu0 0
        %429 = vmatpush1.bf16.msra.mxu0 0
        %430 = vmatprep.subr.bf16.mxu0 0
        %431 = vmatpush1.bf16.msra.mxu0 0
        %432 = vmatprep.subr.bf16.mxu0 0
        %433 = vmatpush1.bf16.msra.mxu0 0
        %434 = vmatprep.subr.bf16.mxu0 0
        %435 = vmatpush1.bf16.msra.mxu0 %v418
        %436 = vmatprep.subr.bf16.mxu0 0
        %437 = vmatpush2.bf16.msra.mxu0 0
        %438 = vmatprep.subr.bf16.mxu0 0
        %439 = vmatpush2.bf16.msra.mxu0 0
        %440 = vmatprep.subr.bf16.mxu0 0
        %441 = vmatpush2.bf16.msra.mxu0 0
        %442 = vmatprep.subr.bf16.mxu0 0
        %443 = vmatpush2.bf16.msra.mxu0 0
        %444 = vmatprep.subr.bf16.mxu0 0
        %445 = vmatpush2.bf16.msra.mxu0 0
        %446 = vmatprep.subr.bf16.mxu0 0
        %447 = vmatpush2.bf16.msra.mxu0 0
        %448 = vmatprep.subr.bf16.mxu0 0
        %449 = vmatpush2.bf16.msra.mxu0 0
        %450 = vmatprep.subr.bf16.mxu0 0
        %451 = vmatpush2.bf16.msra.mxu0 0
        %452 = vmatprep.mubr.bf16.mxu0 0
        %453 = vmatmul.mubr.bf16.gmra.mxu0 %v414
        %v454 = vpop.f32.mrf.mxu0
        %v455 = vadd.f32 %v410, %v454
        %v456 = vpop.f32.mrf.mxu0
        %v457 = vpop.f32.mrf.mxu0
        %v458 = vpop.f32.mrf.mxu0
        %459 = vdwg.mxu0
        %v461 = vcombine.high %v455, %v455
        %v463 = vunpack.c.l.s4 1966171168
        %v464 = vunpack.c.0.s8 %v463
        %v465 = vlaneseq
        %v466 = vshrl.u32 %v465, 7
        %v467 = vsub.s32 %v464, %v466
        %v468 = vrot.slane %v455, %v467
        %v470 = vunpack.c.l.s4 1966171168
        %v471 = vunpack.c.0.s8 %v470
        %v472 = vlaneseq
        %v473 = vshrl.u32 %v472, 7
        %v474 = vsub.s32 %v471, %v473
        %v475 = vrot.slane %v461, %v474
        %v476 = vcombine.high %v468, %v468
        %v477 = vcombine.high %v475, %v475
        %v479 = vunpack.c.l.s4 1966171168
        %v480 = vunpack.c.0.s8 %v479
        %v481 = vlaneseq
        %v482 = vshrl.u32 %v481, 7
        %v483 = vsub.s32 %v480, %v482
        %v484 = vrot.slane %v468, %v483
        %v486 = vunpack.c.l.s4 1966171168
        %v487 = vunpack.c.0.s8 %v486
        %v488 = vlaneseq
        %v489 = vshrl.u32 %v488, 7
        %v490 = vsub.s32 %v487, %v489
        %v491 = vrot.slane %v475, %v490
        %v493 = vunpack.c.l.s4 1966171168
        %v494 = vunpack.c.0.s8 %v493
        %v495 = vlaneseq
        %v496 = vshrl.u32 %v495, 7
        %v497 = vsub.s32 %v494, %v496
        %v498 = vrot.slane %v476, %v497
        %v500 = vunpack.c.l.s4 1966171168
        %v501 = vunpack.c.0.s8 %v500
        %v502 = vlaneseq
        %v503 = vshrl.u32 %v502, 7
        %v504 = vsub.s32 %v501, %v503
        %v505 = vrot.slane %v477, %v504
        %v506 = vcombine.high %v484, %v484
        %v507 = vcombine.high %v491, %v491
        %v508 = vcombine.high %v498, %v498
        %v509 = vcombine.high %v505, %v505
        %vm518 = vcmask 57344
        %519 = vst.msk [vmem:[%s287] sm:$0x1] %vm518, %v484
        %520 = vst.msk [vmem:[%s287 + $0x8] sm:$0x1] %vm518, %v498
        %521 = vst.msk [vmem:[%s287 + $0x10] sm:$0x1] %vm518, %v506
        %522 = vst.msk [vmem:[%s287 + $0x18] sm:$0x1] %vm518, %v508
        %523 = vst.msk [vmem:[%s287 + $0x20] sm:$0x1] %vm518, %v491
        %524 = vst.msk [vmem:[%s287 + $0x28] sm:$0x1] %vm518, %v505
        %525 = vst.msk [vmem:[%s287 + $0x30] sm:$0x1] %vm518, %v507
        %526 = vst.msk [vmem:[%s287 + $0x38] sm:$0x1] %vm518, %v509
        %v527 = vld [vmem:[%s259 + $0x2] sm:$0x1]
        %v528 = vld [vmem:[%s259 + $0x12] sm:$0x1]
        %v529 = vld [vmem:[%s259 + $0x22] sm:$0x1]
        %v530 = vld [vmem:[%s259 + $0x32] sm:$0x1]
        %v531 = vmul.f32 %v527, %v303
        %v532 = vmul.f32 %v528, %v304
        %v533 = vmul.f32 %v529, %v305
        %v534 = vmul.f32 %v530, %v306
        %v535 = vadd.f32 %v531, %v318
        %v536 = vadd.f32 %v532, %v319
        %v537 = vadd.f32 %v533, %v320
        %v538 = vadd.f32 %v534, %v321
        %v539 = vmax.f32 %v535, 0.0
        %v540 = vmax.f32 %v536, 0.0
        %v541 = vmax.f32 %v537, 0.0
        %v542 = vmax.f32 %v538, 0.0
        %v543 = vpack.c.bf16 %v539, %v539
        %v544 = vpack.c.bf16 %v540, %v540
        %v545 = vpack.c.bf16 %v541, %v541
        %v546 = vpack.c.bf16 %v542, %v542
        %v551 = vunpack.c.l.b16 %v543
        %v552 = vunpack.c.l.b16 %v544
        %v553 = vunpack.c.l.b16 %v545
        %v554 = vunpack.c.l.b16 %v546
        %v555 = vrot.slane %v552, 7
        %v556 = vsel %vm347, %v555, %v551
        %v557 = vrot.slane %v553, 6
        %v558 = vsel %vm350, %v557, %v556
        %v559 = vrot.slane %v554, 5
        %v560 = vsel %vm353, %v559, %v558
        %v561 = vpack.c.b16 %v560, %v560
        %v563 = vsel %vm362, %v561, 0
        %565 = vmatprep.subr.bf16.mxu0 0
        %566 = vmatpush1.bf16.msra.mxu0 0
        %567 = vmatprep.subr.bf16.mxu0 0
        %568 = vmatpush1.bf16.msra.mxu0 0
        %569 = vmatprep.subr.bf16.mxu0 0
        %570 = vmatpush1.bf16.msra.mxu0 0
        %571 = vmatprep.subr.bf16.mxu0 0
        %572 = vmatpush1.bf16.msra.mxu0 0
        %573 = vmatprep.subr.bf16.mxu0 0
        %574 = vmatpush1.bf16.msra.mxu0 0
        %575 = vmatprep.subr.bf16.mxu0 0
        %576 = vmatpush1.bf16.msra.mxu0 0
        %577 = vmatprep.subr.bf16.mxu0 0
        %578 = vmatpush1.bf16.msra.mxu0 0
        %579 = vmatprep.subr.bf16.mxu0 0
        %580 = vmatpush1.bf16.msra.mxu0 %v360
        %581 = vmatprep.subr.bf16.mxu0 0
        %582 = vmatpush2.bf16.msra.mxu0 0
        %583 = vmatprep.subr.bf16.mxu0 0
        %584 = vmatpush2.bf16.msra.mxu0 0
        %585 = vmatprep.subr.bf16.mxu0 0
        %586 = vmatpush2.bf16.msra.mxu0 0
        %587 = vmatprep.subr.bf16.mxu0 0
        %588 = vmatpush2.bf16.msra.mxu0 0
        %589 = vmatprep.subr.bf16.mxu0 0
        %590 = vmatpush2.bf16.msra.mxu0 0
        %591 = vmatprep.subr.bf16.mxu0 0
        %592 = vmatpush2.bf16.msra.mxu0 0
        %593 = vmatprep.subr.bf16.mxu0 0
        %594 = vmatpush2.bf16.msra.mxu0 0
        %595 = vmatprep.subr.bf16.mxu0 0
        %596 = vmatpush2.bf16.msra.mxu0 0
        %597 = vmatprep.mubr.bf16.mxu0 0
        %598 = vmatmul.mubr.bf16.gmra.mxu0 %v563
        %v599 = vpop.f32.mrf.mxu0
        %v600 = vadd.f32 0.0, %v599
        %v601 = vpop.f32.mrf.mxu0
        %v602 = vpop.f32.mrf.mxu0
        %v603 = vpop.f32.mrf.mxu0
        %604 = vdwg.mxu0
        %v605 = vpack.c.bf16 %v600, %v600
        %v607 = vsel %vm416, %v605, 0
        %609 = vmatprep.subr.bf16.mxu0 0
        %610 = vmatpush1.bf16.msra.mxu0 0
        %611 = vmatprep.subr.bf16.mxu0 0
        %612 = vmatpush1.bf16.msra.mxu0 0
        %613 = vmatprep.subr.bf16.mxu0 0
        %614 = vmatpush1.bf16.msra.mxu0 0
        %615 = vmatprep.subr.bf16.mxu0 0
        %616 = vmatpush1.bf16.msra.mxu0 0
        %617 = vmatprep.subr.bf16.mxu0 0
        %618 = vmatpush1.bf16.msra.mxu0 0
        %619 = vmatprep.subr.bf16.mxu0 0
        %620 = vmatpush1.bf16.msra.mxu0 0
        %621 = vmatprep.subr.bf16.mxu0 0
        %622 = vmatpush1.bf16.msra.mxu0 0
        %623 = vmatprep.subr.bf16.mxu0 0
        %624 = vmatpush1.bf16.msra.mxu0 %v607
        %625 = vmatprep.subr.bf16.mxu0 0
        %626 = vmatpush2.bf16.msra.mxu0 0
        %627 = vmatprep.subr.bf16.mxu0 0
        %628 = vmatpush2.bf16.msra.mxu0 0
        %629 = vmatprep.subr.bf16.mxu0 0
        %630 = vmatpush2.bf16.msra.mxu0 0
        %631 = vmatprep.subr.bf16.mxu0 0
        %632 = vmatpush2.bf16.msra.mxu0 0
        %633 = vmatprep.subr.bf16.mxu0 0
        %634 = vmatpush2.bf16.msra.mxu0 0
        %635 = vmatprep.subr.bf16.mxu0 0
        %636 = vmatpush2.bf16.msra.mxu0 0
        %637 = vmatprep.subr.bf16.mxu0 0
        %638 = vmatpush2.bf16.msra.mxu0 0
        %639 = vmatprep.subr.bf16.mxu0 0
        %640 = vmatpush2.bf16.msra.mxu0 0
        %641 = vmatprep.mubr.bf16.mxu0 0
        %642 = vmatmul.mubr.bf16.gmra.mxu0 %v414
        %v643 = vpop.f32.mrf.mxu0
        %v644 = vadd.f32 %v410, %v643
        %v645 = vpop.f32.mrf.mxu0
        %v646 = vpop.f32.mrf.mxu0
        %v647 = vpop.f32.mrf.mxu0
        %648 = vdwg.mxu0
        %v650 = vcombine.high %v644, %v644
        %v652 = vunpack.c.l.s4 1966171168
        %v653 = vunpack.c.0.s8 %v652
        %v654 = vlaneseq
        %v655 = vshrl.u32 %v654, 7
        %v656 = vsub.s32 %v653, %v655
        %v657 = vrot.slane %v644, %v656
        %v659 = vunpack.c.l.s4 1966171168
        %v660 = vunpack.c.0.s8 %v659
        %v661 = vlaneseq
        %v662 = vshrl.u32 %v661, 7
        %v663 = vsub.s32 %v660, %v662
        %v664 = vrot.slane %v650, %v663
        %v665 = vcombine.high %v657, %v657
        %v666 = vcombine.high %v664, %v664
        %v668 = vunpack.c.l.s4 1966171168
        %v669 = vunpack.c.0.s8 %v668
        %v670 = vlaneseq
        %v671 = vshrl.u32 %v670, 7
        %v672 = vsub.s32 %v669, %v671
        %v673 = vrot.slane %v657, %v672
        %v675 = vunpack.c.l.s4 1966171168
        %v676 = vunpack.c.0.s8 %v675
        %v677 = vlaneseq
        %v678 = vshrl.u32 %v677, 7
        %v679 = vsub.s32 %v676, %v678
        %v680 = vrot.slane %v664, %v679
        %v682 = vunpack.c.l.s4 1966171168
        %v683 = vunpack.c.0.s8 %v682
        %v684 = vlaneseq
        %v685 = vshrl.u32 %v684, 7
        %v686 = vsub.s32 %v683, %v685
        %v687 = vrot.slane %v665, %v686
        %v689 = vunpack.c.l.s4 1966171168
        %v690 = vunpack.c.0.s8 %v689
        %v691 = vlaneseq
        %v692 = vshrl.u32 %v691, 7
        %v693 = vsub.s32 %v690, %v692
        %v694 = vrot.slane %v666, %v693
        %v695 = vcombine.high %v673, %v673
        %v696 = vcombine.high %v680, %v680
        %v697 = vcombine.high %v687, %v687
        %v698 = vcombine.high %v694, %v694
        %707 = vst.msk [vmem:[%s287 + $0x1] sm:$0x1] %vm518, %v673
        %708 = vst.msk [vmem:[%s287 + $0x9] sm:$0x1] %vm518, %v687
        %709 = vst.msk [vmem:[%s287 + $0x11] sm:$0x1] %vm518, %v695
        %710 = vst.msk [vmem:[%s287 + $0x19] sm:$0x1] %vm518, %v697
        %711 = vst.msk [vmem:[%s287 + $0x21] sm:$0x1] %vm518, %v680
        %712 = vst.msk [vmem:[%s287 + $0x29] sm:$0x1] %vm518, %v694
        %713 = vst.msk [vmem:[%s287 + $0x31] sm:$0x1] %vm518, %v696
        %714 = vst.msk [vmem:[%s287 + $0x39] sm:$0x1] %vm518, %v698
        %v715 = vld [vmem:[%s259 + $0x4] sm:$0x1]
        %v716 = vld [vmem:[%s259 + $0x14] sm:$0x1]
        %v717 = vld [vmem:[%s259 + $0x24] sm:$0x1]
        %v718 = vld [vmem:[%s259 + $0x34] sm:$0x1]
        %v719 = vmul.f32 %v715, %v303
        %v720 = vmul.f32 %v716, %v304
        %v721 = vmul.f32 %v717, %v305
        %v722 = vmul.f32 %v718, %v306
        %v723 = vadd.f32 %v719, %v318
        %v724 = vadd.f32 %v720, %v319
        %v725 = vadd.f32 %v721, %v320
        %v726 = vadd.f32 %v722, %v321
        %v727 = vmax.f32 %v723, 0.0
        %v728 = vmax.f32 %v724, 0.0
        %v729 = vmax.f32 %v725, 0.0
        %v730 = vmax.f32 %v726, 0.0
        %v731 = vpack.c.bf16 %v727, %v727
        %v732 = vpack.c.bf16 %v728, %v728
        %v733 = vpack.c.bf16 %v729, %v729
        %v734 = vpack.c.bf16 %v730, %v730
        %v739 = vunpack.c.l.b16 %v731
        %v740 = vunpack.c.l.b16 %v732
        %v741 = vunpack.c.l.b16 %v733
        %v742 = vunpack.c.l.b16 %v734
        %v743 = vrot.slane %v740, 7
        %v744 = vsel %vm347, %v743, %v739
        %v745 = vrot.slane %v741, 6
        %v746 = vsel %vm350, %v745, %v744
        %v747 = vrot.slane %v742, 5
        %v748 = vsel %vm353, %v747, %v746
        %v749 = vpack.c.b16 %v748, %v748
        %v751 = vsel %vm362, %v749, 0
        %753 = vmatprep.subr.bf16.mxu0 0
        %754 = vmatpush1.bf16.msra.mxu0 0
        %755 = vmatprep.subr.bf16.mxu0 0
        %756 = vmatpush1.bf16.msra.mxu0 0
        %757 = vmatprep.subr.bf16.mxu0 0
        %758 = vmatpush1.bf16.msra.mxu0 0
        %759 = vmatprep.subr.bf16.mxu0 0
        %760 = vmatpush1.bf16.msra.mxu0 0
        %761 = vmatprep.subr.bf16.mxu0 0
        %762 = vmatpush1.bf16.msra.mxu0 0
        %763 = vmatprep.subr.bf16.mxu0 0
        %764 = vmatpush1.bf16.msra.mxu0 0
        %765 = vmatprep.subr.bf16.mxu0 0
        %766 = vmatpush1.bf16.msra.mxu0 0
        %767 = vmatprep.subr.bf16.mxu0 0
        %768 = vmatpush1.bf16.msra.mxu0 %v360
        %769 = vmatprep.subr.bf16.mxu0 0
        %770 = vmatpush2.bf16.msra.mxu0 0
        %771 = vmatprep.subr.bf16.mxu0 0
        %772 = vmatpush2.bf16.msra.mxu0 0
        %773 = vmatprep.subr.bf16.mxu0 0
        %774 = vmatpush2.bf16.msra.mxu0 0
        %775 = vmatprep.subr.bf16.mxu0 0
        %776 = vmatpush2.bf16.msra.mxu0 0
        %777 = vmatprep.subr.bf16.mxu0 0
        %778 = vmatpush2.bf16.msra.mxu0 0
        %779 = vmatprep.subr.bf16.mxu0 0
        %780 = vmatpush2.bf16.msra.mxu0 0
        %781 = vmatprep.subr.bf16.mxu0 0
        %782 = vmatpush2.bf16.msra.mxu0 0
        %783 = vmatprep.subr.bf16.mxu0 0
        %784 = vmatpush2.bf16.msra.mxu0 0
        %785 = vmatprep.mubr.bf16.mxu0 0
        %786 = vmatmul.mubr.bf16.gmra.mxu0 %v751
        %v787 = vpop.f32.mrf.mxu0
        %v788 = vadd.f32 0.0, %v787
        %v789 = vpop.f32.mrf.mxu0
        %v790 = vpop.f32.mrf.mxu0
        %v791 = vpop.f32.mrf.mxu0
        %792 = vdwg.mxu0
        %v793 = vpack.c.bf16 %v788, %v788
        %v795 = vsel %vm416, %v793, 0
        %797 = vmatprep.subr.bf16.mxu0 0
        %798 = vmatpush1.bf16.msra.mxu0 0
        %799 = vmatprep.subr.bf16.mxu0 0
        %800 = vmatpush1.bf16.msra.mxu0 0
        %801 = vmatprep.subr.bf16.mxu0 0
        %802 = vmatpush1.bf16.msra.mxu0 0
        %803 = vmatprep.subr.bf16.mxu0 0
        %804 = vmatpush1.bf16.msra.mxu0 0
        %805 = vmatprep.subr.bf16.mxu0 0
        %806 = vmatpush1.bf16.msra.mxu0 0
        %807 = vmatprep.subr.bf16.mxu0 0
        %808 = vmatpush1.bf16.msra.mxu0 0
        %809 = vmatprep.subr.bf16.mxu0 0
        %810 = vmatpush1.bf16.msra.mxu0 0
        %811 = vmatprep.subr.bf16.mxu0 0
        %812 = vmatpush1.bf16.msra.mxu0 %v795
        %813 = vmatprep.subr.bf16.mxu0 0
        %814 = vmatpush2.bf16.msra.mxu0 0
        %815 = vmatprep.subr.bf16.mxu0 0
        %816 = vmatpush2.bf16.msra.mxu0 0
        %817 = vmatprep.subr.bf16.mxu0 0
        %818 = vmatpush2.bf16.msra.mxu0 0
        %819 = vmatprep.subr.bf16.mxu0 0
        %820 = vmatpush2.bf16.msra.mxu0 0
        %821 = vmatprep.subr.bf16.mxu0 0
        %822 = vmatpush2.bf16.msra.mxu0 0
        %823 = vmatprep.subr.bf16.mxu0 0
        %824 = vmatpush2.bf16.msra.mxu0 0
        %825 = vmatprep.subr.bf16.mxu0 0
        %826 = vmatpush2.bf16.msra.mxu0 0
        %827 = vmatprep.subr.bf16.mxu0 0
        %828 = vmatpush2.bf16.msra.mxu0 0
        %829 = vmatprep.mubr.bf16.mxu0 0
        %830 = vmatmul.mubr.bf16.gmra.mxu0 %v414
        %v831 = vpop.f32.mrf.mxu0
        %v832 = vadd.f32 %v410, %v831
        %v833 = vpop.f32.mrf.mxu0
        %v834 = vpop.f32.mrf.mxu0
        %v835 = vpop.f32.mrf.mxu0
        %836 = vdwg.mxu0
        %v838 = vcombine.high %v832, %v832
        %v840 = vunpack.c.l.s4 1966171168
        %v841 = vunpack.c.0.s8 %v840
        %v842 = vlaneseq
        %v843 = vshrl.u32 %v842, 7
        %v844 = vsub.s32 %v841, %v843
        %v845 = vrot.slane %v832, %v844
        %v847 = vunpack.c.l.s4 1966171168
        %v848 = vunpack.c.0.s8 %v847
        %v849 = vlaneseq
        %v850 = vshrl.u32 %v849, 7
        %v851 = vsub.s32 %v848, %v850
        %v852 = vrot.slane %v838, %v851
        %v853 = vcombine.high %v845, %v845
        %v854 = vcombine.high %v852, %v852
        %v856 = vunpack.c.l.s4 1966171168
        %v857 = vunpack.c.0.s8 %v856
        %v858 = vlaneseq
        %v859 = vshrl.u32 %v858, 7
        %v860 = vsub.s32 %v857, %v859
        %v861 = vrot.slane %v845, %v860
        %v863 = vunpack.c.l.s4 1966171168
        %v864 = vunpack.c.0.s8 %v863
        %v865 = vlaneseq
        %v866 = vshrl.u32 %v865, 7
        %v867 = vsub.s32 %v864, %v866
        %v868 = vrot.slane %v852, %v867
        %v870 = vunpack.c.l.s4 1966171168
        %v871 = vunpack.c.0.s8 %v870
        %v872 = vlaneseq
        %v873 = vshrl.u32 %v872, 7
        %v874 = vsub.s32 %v871, %v873
        %v875 = vrot.slane %v853, %v874
        %v877 = vunpack.c.l.s4 1966171168
        %v878 = vunpack.c.0.s8 %v877
        %v879 = vlaneseq
        %v880 = vshrl.u32 %v879, 7
        %v881 = vsub.s32 %v878, %v880
        %v882 = vrot.slane %v854, %v881
        %v883 = vcombine.high %v861, %v861
        %v884 = vcombine.high %v868, %v868
        %v885 = vcombine.high %v875, %v875
        %v886 = vcombine.high %v882, %v882
        %895 = vst.msk [vmem:[%s287 + $0x2] sm:$0x1] %vm518, %v861
        %896 = vst.msk [vmem:[%s287 + $0xa] sm:$0x1] %vm518, %v875
        %897 = vst.msk [vmem:[%s287 + $0x12] sm:$0x1] %vm518, %v883
        %898 = vst.msk [vmem:[%s287 + $0x1a] sm:$0x1] %vm518, %v885
        %899 = vst.msk [vmem:[%s287 + $0x22] sm:$0x1] %vm518, %v868
        %900 = vst.msk [vmem:[%s287 + $0x2a] sm:$0x1] %vm518, %v882
        %901 = vst.msk [vmem:[%s287 + $0x32] sm:$0x1] %vm518, %v884
        %902 = vst.msk [vmem:[%s287 + $0x3a] sm:$0x1] %vm518, %v886
        %v903 = vld [vmem:[%s259 + $0x6] sm:$0x1]
        %v904 = vld [vmem:[%s259 + $0x16] sm:$0x1]
        %v905 = vld [vmem:[%s259 + $0x26] sm:$0x1]
        %v906 = vld [vmem:[%s259 + $0x36] sm:$0x1]
        %v907 = vmul.f32 %v903, %v303
        %v908 = vmul.f32 %v904, %v304
        %v909 = vmul.f32 %v905, %v305
        %v910 = vmul.f32 %v906, %v306
        %v911 = vadd.f32 %v907, %v318
        %v912 = vadd.f32 %v908, %v319
        %v913 = vadd.f32 %v909, %v320
        %v914 = vadd.f32 %v910, %v321
        %v915 = vmax.f32 %v911, 0.0
        %v916 = vmax.f32 %v912, 0.0
        %v917 = vmax.f32 %v913, 0.0
        %v918 = vmax.f32 %v914, 0.0
        %v919 = vpack.c.bf16 %v915, %v915
        %v920 = vpack.c.bf16 %v916, %v916
        %v921 = vpack.c.bf16 %v917, %v917
        %v922 = vpack.c.bf16 %v918, %v918
        %v927 = vunpack.c.l.b16 %v919
        %v928 = vunpack.c.l.b16 %v920
        %v929 = vunpack.c.l.b16 %v921
        %v930 = vunpack.c.l.b16 %v922
        %v931 = vrot.slane %v928, 7
        %v932 = vsel %vm347, %v931, %v927
        %v933 = vrot.slane %v929, 6
        %v934 = vsel %vm350, %v933, %v932
        %v935 = vrot.slane %v930, 5
        %v936 = vsel %vm353, %v935, %v934
        %v937 = vpack.c.b16 %v936, %v936
        %v939 = vsel %vm362, %v937, 0
        %941 = vmatprep.subr.bf16.mxu0 0
        %942 = vmatpush1.bf16.msra.mxu0 0
        %943 = vmatprep.subr.bf16.mxu0 0
        %944 = vmatpush1.bf16.msra.mxu0 0
        %945 = vmatprep.subr.bf16.mxu0 0
        %946 = vmatpush1.bf16.msra.mxu0 0
        %947 = vmatprep.subr.bf16.mxu0 0
        %948 = vmatpush1.bf16.msra.mxu0 0
        %949 = vmatprep.subr.bf16.mxu0 0
        %950 = vmatpush1.bf16.msra.mxu0 0
        %951 = vmatprep.subr.bf16.mxu0 0
        %952 = vmatpush1.bf16.msra.mxu0 0
        %953 = vmatprep.subr.bf16.mxu0 0
        %954 = vmatpush1.bf16.msra.mxu0 0
        %955 = vmatprep.subr.bf16.mxu0 0
        %956 = vmatpush1.bf16.msra.mxu0 %v360
        %957 = vmatprep.subr.bf16.mxu0 0
        %958 = vmatpush2.bf16.msra.mxu0 0
        %959 = vmatprep.subr.bf16.mxu0 0
        %960 = vmatpush2.bf16.msra.mxu0 0
        %961 = vmatprep.subr.bf16.mxu0 0
        %962 = vmatpush2.bf16.msra.mxu0 0
        %963 = vmatprep.subr.bf16.mxu0 0
        %964 = vmatpush2.bf16.msra.mxu0 0
        %965 = vmatprep.subr.bf16.mxu0 0
        %966 = vmatpush2.bf16.msra.mxu0 0
        %967 = vmatprep.subr.bf16.mxu0 0
        %968 = vmatpush2.bf16.msra.mxu0 0
        %969 = vmatprep.subr.bf16.mxu0 0
        %970 = vmatpush2.bf16.msra.mxu0 0
        %971 = vmatprep.subr.bf16.mxu0 0
        %972 = vmatpush2.bf16.msra.mxu0 0
        %973 = vmatprep.mubr.bf16.mxu0 0
        %974 = vmatmul.mubr.bf16.gmra.mxu0 %v939
        %v975 = vpop.f32.mrf.mxu0
        %v976 = vadd.f32 0.0, %v975
        %v977 = vpop.f32.mrf.mxu0
        %v978 = vpop.f32.mrf.mxu0
        %v979 = vpop.f32.mrf.mxu0
        %980 = vdwg.mxu0
        %v981 = vpack.c.bf16 %v976, %v976
        %v983 = vsel %vm416, %v981, 0
        %985 = vmatprep.subr.bf16.mxu0 0
        %986 = vmatpush1.bf16.msra.mxu0 0
        %987 = vmatprep.subr.bf16.mxu0 0
        %988 = vmatpush1.bf16.msra.mxu0 0
        %989 = vmatprep.subr.bf16.mxu0 0
        %990 = vmatpush1.bf16.msra.mxu0 0
        %991 = vmatprep.subr.bf16.mxu0 0
        %992 = vmatpush1.bf16.msra.mxu0 0
        %993 = vmatprep.subr.bf16.mxu0 0
        %994 = vmatpush1.bf16.msra.mxu0 0
        %995 = vmatprep.subr.bf16.mxu0 0
        %996 = vmatpush1.bf16.msra.mxu0 0
        %997 = vmatprep.subr.bf16.mxu0 0
        %998 = vmatpush1.bf16.msra.mxu0 0
        %999 = vmatprep.subr.bf16.mxu0 0
        %1000 = vmatpush1.bf16.msra.mxu0 %v983
        %1001 = vmatprep.subr.bf16.mxu0 0
        %1002 = vmatpush2.bf16.msra.mxu0 0
        %1003 = vmatprep.subr.bf16.mxu0 0
        %1004 = vmatpush2.bf16.msra.mxu0 0
        %1005 = vmatprep.subr.bf16.mxu0 0
        %1006 = vmatpush2.bf16.msra.mxu0 0
        %1007 = vmatprep.subr.bf16.mxu0 0
        %1008 = vmatpush2.bf16.msra.mxu0 0
        %1009 = vmatprep.subr.bf16.mxu0 0
        %1010 = vmatpush2.bf16.msra.mxu0 0
        %1011 = vmatprep.subr.bf16.mxu0 0
        %1012 = vmatpush2.bf16.msra.mxu0 0
        %1013 = vmatprep.subr.bf16.mxu0 0
        %1014 = vmatpush2.bf16.msra.mxu0 0
        %1015 = vmatprep.subr.bf16.mxu0 0
        %1016 = vmatpush2.bf16.msra.mxu0 0
        %1017 = vmatprep.mubr.bf16.mxu0 0
        %1018 = vmatmul.mubr.bf16.gmra.mxu0 %v414
        %v1019 = vpop.f32.mrf.mxu0
        %v1020 = vadd.f32 %v410, %v1019
        %v1021 = vpop.f32.mrf.mxu0
        %v1022 = vpop.f32.mrf.mxu0
        %v1023 = vpop.f32.mrf.mxu0
        %1024 = vdwg.mxu0
        %v1026 = vcombine.high %v1020, %v1020
        %v1028 = vunpack.c.l.s4 1966171168
        %v1029 = vunpack.c.0.s8 %v1028
        %v1030 = vlaneseq
        %v1031 = vshrl.u32 %v1030, 7
        %v1032 = vsub.s32 %v1029, %v1031
        %v1033 = vrot.slane %v1020, %v1032
        %v1035 = vunpack.c.l.s4 1966171168
        %v1036 = vunpack.c.0.s8 %v1035
        %v1037 = vlaneseq
        %v1038 = vshrl.u32 %v1037, 7
        %v1039 = vsub.s32 %v1036, %v1038
        %v1040 = vrot.slane %v1026, %v1039
        %v1041 = vcombine.high %v1033, %v1033
        %v1042 = vcombine.high %v1040, %v1040
        %v1044 = vunpack.c.l.s4 1966171168
        %v1045 = vunpack.c.0.s8 %v1044
        %v1046 = vlaneseq
        %v1047 = vshrl.u32 %v1046, 7
        %v1048 = vsub.s32 %v1045, %v1047
        %v1049 = vrot.slane %v1033, %v1048
        %v1051 = vunpack.c.l.s4 1966171168
        %v1052 = vunpack.c.0.s8 %v1051
        %v1053 = vlaneseq
        %v1054 = vshrl.u32 %v1053, 7
        %v1055 = vsub.s32 %v1052, %v1054
        %v1056 = vrot.slane %v1040, %v1055
        %v1058 = vunpack.c.l.s4 1966171168
        %v1059 = vunpack.c.0.s8 %v1058
        %v1060 = vlaneseq
        %v1061 = vshrl.u32 %v1060, 7
        %v1062 = vsub.s32 %v1059, %v1061
        %v1063 = vrot.slane %v1041, %v1062
        %v1065 = vunpack.c.l.s4 1966171168
        %v1066 = vunpack.c.0.s8 %v1065
        %v1067 = vlaneseq
        %v1068 = vshrl.u32 %v1067, 7
        %v1069 = vsub.s32 %v1066, %v1068
        %v1070 = vrot.slane %v1042, %v1069
        %v1071 = vcombine.high %v1049, %v1049
        %v1072 = vcombine.high %v1056, %v1056
        %v1073 = vcombine.high %v1063, %v1063
        %v1074 = vcombine.high %v1070, %v1070
        %1083 = vst.msk [vmem:[%s287 + $0x3] sm:$0x1] %vm518, %v1049
        %1084 = vst.msk [vmem:[%s287 + $0xb] sm:$0x1] %vm518, %v1063
        %1085 = vst.msk [vmem:[%s287 + $0x13] sm:$0x1] %vm518, %v1071
        %1086 = vst.msk [vmem:[%s287 + $0x1b] sm:$0x1] %vm518, %v1073
        %1087 = vst.msk [vmem:[%s287 + $0x23] sm:$0x1] %vm518, %v1056
        %1088 = vst.msk [vmem:[%s287 + $0x2b] sm:$0x1] %vm518, %v1070
        %1089 = vst.msk [vmem:[%s287 + $0x33] sm:$0x1] %vm518, %v1072
        %1090 = vst.msk [vmem:[%s287 + $0x3b] sm:$0x1] %vm518, %v1074
        %v1091 = vld [vmem:[%s259 + $0x8] sm:$0x1]
        %v1092 = vld [vmem:[%s259 + $0x18] sm:$0x1]
        %v1093 = vld [vmem:[%s259 + $0x28] sm:$0x1]
        %v1094 = vld [vmem:[%s259 + $0x38] sm:$0x1]
        %v1095 = vmul.f32 %v1091, %v303
        %v1096 = vmul.f32 %v1092, %v304
        %v1097 = vmul.f32 %v1093, %v305
        %v1098 = vmul.f32 %v1094, %v306
        %v1099 = vadd.f32 %v1095, %v318
        %v1100 = vadd.f32 %v1096, %v319
        %v1101 = vadd.f32 %v1097, %v320
        %v1102 = vadd.f32 %v1098, %v321
        %v1103 = vmax.f32 %v1099, 0.0
        %v1104 = vmax.f32 %v1100, 0.0
        %v1105 = vmax.f32 %v1101, 0.0
        %v1106 = vmax.f32 %v1102, 0.0
        %v1107 = vpack.c.bf16 %v1103, %v1103
        %v1108 = vpack.c.bf16 %v1104, %v1104
        %v1109 = vpack.c.bf16 %v1105, %v1105
        %v1110 = vpack.c.bf16 %v1106, %v1106
        %v1115 = vunpack.c.l.b16 %v1107
        %v1116 = vunpack.c.l.b16 %v1108
        %v1117 = vunpack.c.l.b16 %v1109
        %v1118 = vunpack.c.l.b16 %v1110
        %v1119 = vrot.slane %v1116, 7
        %v1120 = vsel %vm347, %v1119, %v1115
        %v1121 = vrot.slane %v1117, 6
        %v1122 = vsel %vm350, %v1121, %v1120
        %v1123 = vrot.slane %v1118, 5
        %v1124 = vsel %vm353, %v1123, %v1122
        %v1125 = vpack.c.b16 %v1124, %v1124
        %v1127 = vsel %vm362, %v1125, 0
        %1129 = vmatprep.subr.bf16.mxu0 0
        %1130 = vmatpush1.bf16.msra.mxu0 0
        %1131 = vmatprep.subr.bf16.mxu0 0
        %1132 = vmatpush1.bf16.msra.mxu0 0
        %1133 = vmatprep.subr.bf16.mxu0 0
        %1134 = vmatpush1.bf16.msra.mxu0 0
        %1135 = vmatprep.subr.bf16.mxu0 0
        %1136 = vmatpush1.bf16.msra.mxu0 0
        %1137 = vmatprep.subr.bf16.mxu0 0
        %1138 = vmatpush1.bf16.msra.mxu0 0
        %1139 = vmatprep.subr.bf16.mxu0 0
        %1140 = vmatpush1.bf16.msra.mxu0 0
        %1141 = vmatprep.subr.bf16.mxu0 0
        %1142 = vmatpush1.bf16.msra.mxu0 0
        %1143 = vmatprep.subr.bf16.mxu0 0
        %1144 = vmatpush1.bf16.msra.mxu0 %v360
        %1145 = vmatprep.subr.bf16.mxu0 0
        %1146 = vmatpush2.bf16.msra.mxu0 0
        %1147 = vmatprep.subr.bf16.mxu0 0
        %1148 = vmatpush2.bf16.msra.mxu0 0
        %1149 = vmatprep.subr.bf16.mxu0 0
        %1150 = vmatpush2.bf16.msra.mxu0 0
        %1151 = vmatprep.subr.bf16.mxu0 0
        %1152 = vmatpush2.bf16.msra.mxu0 0
        %1153 = vmatprep.subr.bf16.mxu0 0
        %1154 = vmatpush2.bf16.msra.mxu0 0
        %1155 = vmatprep.subr.bf16.mxu0 0
        %1156 = vmatpush2.bf16.msra.mxu0 0
        %1157 = vmatprep.subr.bf16.mxu0 0
        %1158 = vmatpush2.bf16.msra.mxu0 0
        %1159 = vmatprep.subr.bf16.mxu0 0
        %1160 = vmatpush2.bf16.msra.mxu0 0
        %1161 = vmatprep.mubr.bf16.mxu0 0
        %1162 = vmatmul.mubr.bf16.gmra.mxu0 %v1127
        %v1163 = vpop.f32.mrf.mxu0
        %v1164 = vadd.f32 0.0, %v1163
        %v1165 = vpop.f32.mrf.mxu0
        %v1166 = vpop.f32.mrf.mxu0
        %v1167 = vpop.f32.mrf.mxu0
        %1168 = vdwg.mxu0
        %v1169 = vpack.c.bf16 %v1164, %v1164
        %v1171 = vsel %vm416, %v1169, 0
        %1173 = vmatprep.subr.bf16.mxu0 0
        %1174 = vmatpush1.bf16.msra.mxu0 0
        %1175 = vmatprep.subr.bf16.mxu0 0
        %1176 = vmatpush1.bf16.msra.mxu0 0
        %1177 = vmatprep.subr.bf16.mxu0 0
        %1178 = vmatpush1.bf16.msra.mxu0 0
        %1179 = vmatprep.subr.bf16.mxu0 0
        %1180 = vmatpush1.bf16.msra.mxu0 0
        %1181 = vmatprep.subr.bf16.mxu0 0
        %1182 = vmatpush1.bf16.msra.mxu0 0
        %1183 = vmatprep.subr.bf16.mxu0 0
        %1184 = vmatpush1.bf16.msra.mxu0 0
        %1185 = vmatprep.subr.bf16.mxu0 0
        %1186 = vmatpush1.bf16.msra.mxu0 0
        %1187 = vmatprep.subr.bf16.mxu0 0
        %1188 = vmatpush1.bf16.msra.mxu0 %v1171
        %1189 = vmatprep.subr.bf16.mxu0 0
        %1190 = vmatpush2.bf16.msra.mxu0 0
        %1191 = vmatprep.subr.bf16.mxu0 0
        %1192 = vmatpush2.bf16.msra.mxu0 0
        %1193 = vmatprep.subr.bf16.mxu0 0
        %1194 = vmatpush2.bf16.msra.mxu0 0
        %1195 = vmatprep.subr.bf16.mxu0 0
        %1196 = vmatpush2.bf16.msra.mxu0 0
        %1197 = vmatprep.subr.bf16.mxu0 0
        %1198 = vmatpush2.bf16.msra.mxu0 0
        %1199 = vmatprep.subr.bf16.mxu0 0
        %1200 = vmatpush2.bf16.msra.mxu0 0
        %1201 = vmatprep.subr.bf16.mxu0 0
        %1202 = vmatpush2.bf16.msra.mxu0 0
        %1203 = vmatprep.subr.bf16.mxu0 0
        %1204 = vmatpush2.bf16.msra.mxu0 0
        %1205 = vmatprep.mubr.bf16.mxu0 0
        %1206 = vmatmul.mubr.bf16.gmra.mxu0 %v414
        %v1207 = vpop.f32.mrf.mxu0
        %v1208 = vadd.f32 %v410, %v1207
        %v1209 = vpop.f32.mrf.mxu0
        %v1210 = vpop.f32.mrf.mxu0
        %v1211 = vpop.f32.mrf.mxu0
        %1212 = vdwg.mxu0
        %v1214 = vcombine.high %v1208, %v1208
        %v1216 = vunpack.c.l.s4 1966171168
        %v1217 = vunpack.c.0.s8 %v1216
        %v1218 = vlaneseq
        %v1219 = vshrl.u32 %v1218, 7
        %v1220 = vsub.s32 %v1217, %v1219
        %v1221 = vrot.slane %v1208, %v1220
        %v1223 = vunpack.c.l.s4 1966171168
        %v1224 = vunpack.c.0.s8 %v1223
        %v1225 = vlaneseq
        %v1226 = vshrl.u32 %v1225, 7
        %v1227 = vsub.s32 %v1224, %v1226
        %v1228 = vrot.slane %v1214, %v1227
        %v1229 = vcombine.high %v1221, %v1221
        %v1230 = vcombine.high %v1228, %v1228
        %v1232 = vunpack.c.l.s4 1966171168
        %v1233 = vunpack.c.0.s8 %v1232
        %v1234 = vlaneseq
        %v1235 = vshrl.u32 %v1234, 7
        %v1236 = vsub.s32 %v1233, %v1235
        %v1237 = vrot.slane %v1221, %v1236
        %v1239 = vunpack.c.l.s4 1966171168
        %v1240 = vunpack.c.0.s8 %v1239
        %v1241 = vlaneseq
        %v1242 = vshrl.u32 %v1241, 7
        %v1243 = vsub.s32 %v1240, %v1242
        %v1244 = vrot.slane %v1228, %v1243
        %v1246 = vunpack.c.l.s4 1966171168
        %v1247 = vunpack.c.0.s8 %v1246
        %v1248 = vlaneseq
        %v1249 = vshrl.u32 %v1248, 7
        %v1250 = vsub.s32 %v1247, %v1249
        %v1251 = vrot.slane %v1229, %v1250
        %v1253 = vunpack.c.l.s4 1966171168
        %v1254 = vunpack.c.0.s8 %v1253
        %v1255 = vlaneseq
        %v1256 = vshrl.u32 %v1255, 7
        %v1257 = vsub.s32 %v1254, %v1256
        %v1258 = vrot.slane %v1230, %v1257
        %v1259 = vcombine.high %v1237, %v1237
        %v1260 = vcombine.high %v1244, %v1244
        %v1261 = vcombine.high %v1251, %v1251
        %v1262 = vcombine.high %v1258, %v1258
        %1271 = vst.msk [vmem:[%s287 + $0x4] sm:$0x1] %vm518, %v1237
        %1272 = vst.msk [vmem:[%s287 + $0xc] sm:$0x1] %vm518, %v1251
        %1273 = vst.msk [vmem:[%s287 + $0x14] sm:$0x1] %vm518, %v1259
        %1274 = vst.msk [vmem:[%s287 + $0x1c] sm:$0x1] %vm518, %v1261
        %1275 = vst.msk [vmem:[%s287 + $0x24] sm:$0x1] %vm518, %v1244
        %1276 = vst.msk [vmem:[%s287 + $0x2c] sm:$0x1] %vm518, %v1258
        %1277 = vst.msk [vmem:[%s287 + $0x34] sm:$0x1] %vm518, %v1260
        %1278 = vst.msk [vmem:[%s287 + $0x3c] sm:$0x1] %vm518, %v1262
        %v1279 = vld [vmem:[%s259 + $0xa] sm:$0x1]
        %v1280 = vld [vmem:[%s259 + $0x1a] sm:$0x1]
        %v1281 = vld [vmem:[%s259 + $0x2a] sm:$0x1]
        %v1282 = vld [vmem:[%s259 + $0x3a] sm:$0x1]
        %v1283 = vmul.f32 %v1279, %v303
        %v1284 = vmul.f32 %v1280, %v304
        %v1285 = vmul.f32 %v1281, %v305
        %v1286 = vmul.f32 %v1282, %v306
        %v1287 = vadd.f32 %v1283, %v318
        %v1288 = vadd.f32 %v1284, %v319
        %v1289 = vadd.f32 %v1285, %v320
        %v1290 = vadd.f32 %v1286, %v321
        %v1291 = vmax.f32 %v1287, 0.0
        %v1292 = vmax.f32 %v1288, 0.0
        %v1293 = vmax.f32 %v1289, 0.0
        %v1294 = vmax.f32 %v1290, 0.0
        %v1295 = vpack.c.bf16 %v1291, %v1291
        %v1296 = vpack.c.bf16 %v1292, %v1292
        %v1297 = vpack.c.bf16 %v1293, %v1293
        %v1298 = vpack.c.bf16 %v1294, %v1294
        %v1303 = vunpack.c.l.b16 %v1295
        %v1304 = vunpack.c.l.b16 %v1296
        %v1305 = vunpack.c.l.b16 %v1297
        %v1306 = vunpack.c.l.b16 %v1298
        %v1307 = vrot.slane %v1304, 7
        %v1308 = vsel %vm347, %v1307, %v1303
        %v1309 = vrot.slane %v1305, 6
        %v1310 = vsel %vm350, %v1309, %v1308
        %v1311 = vrot.slane %v1306, 5
        %v1312 = vsel %vm353, %v1311, %v1310
        %v1313 = vpack.c.b16 %v1312, %v1312
        %v1315 = vsel %vm362, %v1313, 0
        %1317 = vmatprep.subr.bf16.mxu0 0
        %1318 = vmatpush1.bf16.msra.mxu0 0
        %1319 = vmatprep.subr.bf16.mxu0 0
        %1320 = vmatpush1.bf16.msra.mxu0 0
        %1321 = vmatprep.subr.bf16.mxu0 0
        %1322 = vmatpush1.bf16.msra.mxu0 0
        %1323 = vmatprep.subr.bf16.mxu0 0
        %1324 = vmatpush1.bf16.msra.mxu0 0
        %1325 = vmatprep.subr.bf16.mxu0 0
        %1326 = vmatpush1.bf16.msra.mxu0 0
        %1327 = vmatprep.subr.bf16.mxu0 0
        %1328 = vmatpush1.bf16.msra.mxu0 0
        %1329 = vmatprep.subr.bf16.mxu0 0
        %1330 = vmatpush1.bf16.msra.mxu0 0
        %1331 = vmatprep.subr.bf16.mxu0 0
        %1332 = vmatpush1.bf16.msra.mxu0 %v360
        %1333 = vmatprep.subr.bf16.mxu0 0
        %1334 = vmatpush2.bf16.msra.mxu0 0
        %1335 = vmatprep.subr.bf16.mxu0 0
        %1336 = vmatpush2.bf16.msra.mxu0 0
        %1337 = vmatprep.subr.bf16.mxu0 0
        %1338 = vmatpush2.bf16.msra.mxu0 0
        %1339 = vmatprep.subr.bf16.mxu0 0
        %1340 = vmatpush2.bf16.msra.mxu0 0
        %1341 = vmatprep.subr.bf16.mxu0 0
        %1342 = vmatpush2.bf16.msra.mxu0 0
        %1343 = vmatprep.subr.bf16.mxu0 0
        %1344 = vmatpush2.bf16.msra.mxu0 0
        %1345 = vmatprep.subr.bf16.mxu0 0
        %1346 = vmatpush2.bf16.msra.mxu0 0
        %1347 = vmatprep.subr.bf16.mxu0 0
        %1348 = vmatpush2.bf16.msra.mxu0 0
        %1349 = vmatprep.mubr.bf16.mxu0 0
        %1350 = vmatmul.mubr.bf16.gmra.mxu0 %v1315
        %v1351 = vpop.f32.mrf.mxu0
        %v1352 = vadd.f32 0.0, %v1351
        %v1353 = vpop.f32.mrf.mxu0
        %v1354 = vpop.f32.mrf.mxu0
        %v1355 = vpop.f32.mrf.mxu0
        %1356 = vdwg.mxu0
        %v1357 = vpack.c.bf16 %v1352, %v1352
        %v1359 = vsel %vm416, %v1357, 0
        %1361 = vmatprep.subr.bf16.mxu0 0
        %1362 = vmatpush1.bf16.msra.mxu0 0
        %1363 = vmatprep.subr.bf16.mxu0 0
        %1364 = vmatpush1.bf16.msra.mxu0 0
        %1365 = vmatprep.subr.bf16.mxu0 0
        %1366 = vmatpush1.bf16.msra.mxu0 0
        %1367 = vmatprep.subr.bf16.mxu0 0
        %1368 = vmatpush1.bf16.msra.mxu0 0
        %1369 = vmatprep.subr.bf16.mxu0 0
        %1370 = vmatpush1.bf16.msra.mxu0 0
        %1371 = vmatprep.subr.bf16.mxu0 0
        %1372 = vmatpush1.bf16.msra.mxu0 0
        %1373 = vmatprep.subr.bf16.mxu0 0
        %1374 = vmatpush1.bf16.msra.mxu0 0
        %1375 = vmatprep.subr.bf16.mxu0 0
        %1376 = vmatpush1.bf16.msra.mxu0 %v1359
        %1377 = vmatprep.subr.bf16.mxu0 0
        %1378 = vmatpush2.bf16.msra.mxu0 0
        %1379 = vmatprep.subr.bf16.mxu0 0
        %1380 = vmatpush2.bf16.msra.mxu0 0
        %1381 = vmatprep.subr.bf16.mxu0 0
        %1382 = vmatpush2.bf16.msra.mxu0 0
        %1383 = vmatprep.subr.bf16.mxu0 0
        %1384 = vmatpush2.bf16.msra.mxu0 0
        %1385 = vmatprep.subr.bf16.mxu0 0
        %1386 = vmatpush2.bf16.msra.mxu0 0
        %1387 = vmatprep.subr.bf16.mxu0 0
        %1388 = vmatpush2.bf16.msra.mxu0 0
        %1389 = vmatprep.subr.bf16.mxu0 0
        %1390 = vmatpush2.bf16.msra.mxu0 0
        %1391 = vmatprep.subr.bf16.mxu0 0
        %1392 = vmatpush2.bf16.msra.mxu0 0
        %1393 = vmatprep.mubr.bf16.mxu0 0
        %1394 = vmatmul.mubr.bf16.gmra.mxu0 %v414
        %v1395 = vpop.f32.mrf.mxu0
        %v1396 = vadd.f32 %v410, %v1395
        %v1397 = vpop.f32.mrf.mxu0
        %v1398 = vpop.f32.mrf.mxu0
        %v1399 = vpop.f32.mrf.mxu0
        %1400 = vdwg.mxu0
        %v1402 = vcombine.high %v1396, %v1396
        %v1404 = vunpack.c.l.s4 1966171168
        %v1405 = vunpack.c.0.s8 %v1404
        %v1406 = vlaneseq
        %v1407 = vshrl.u32 %v1406, 7
        %v1408 = vsub.s32 %v1405, %v1407
        %v1409 = vrot.slane %v1396, %v1408
        %v1411 = vunpack.c.l.s4 1966171168
        %v1412 = vunpack.c.0.s8 %v1411
        %v1413 = vlaneseq
        %v1414 = vshrl.u32 %v1413, 7
        %v1415 = vsub.s32 %v1412, %v1414
        %v1416 = vrot.slane %v1402, %v1415
        %v1417 = vcombine.high %v1409, %v1409
        %v1418 = vcombine.high %v1416, %v1416
        %v1420 = vunpack.c.l.s4 1966171168
        %v1421 = vunpack.c.0.s8 %v1420
        %v1422 = vlaneseq
        %v1423 = vshrl.u32 %v1422, 7
        %v1424 = vsub.s32 %v1421, %v1423
        %v1425 = vrot.slane %v1409, %v1424
        %v1427 = vunpack.c.l.s4 1966171168
        %v1428 = vunpack.c.0.s8 %v1427
        %v1429 = vlaneseq
        %v1430 = vshrl.u32 %v1429, 7
        %v1431 = vsub.s32 %v1428, %v1430
        %v1432 = vrot.slane %v1416, %v1431
        %v1434 = vunpack.c.l.s4 1966171168
        %v1435 = vunpack.c.0.s8 %v1434
        %v1436 = vlaneseq
        %v1437 = vshrl.u32 %v1436, 7
        %v1438 = vsub.s32 %v1435, %v1437
        %v1439 = vrot.slane %v1417, %v1438
        %v1441 = vunpack.c.l.s4 1966171168
        %v1442 = vunpack.c.0.s8 %v1441
        %v1443 = vlaneseq
        %v1444 = vshrl.u32 %v1443, 7
        %v1445 = vsub.s32 %v1442, %v1444
        %v1446 = vrot.slane %v1418, %v1445
        %v1447 = vcombine.high %v1425, %v1425
        %v1448 = vcombine.high %v1432, %v1432
        %v1449 = vcombine.high %v1439, %v1439
        %v1450 = vcombine.high %v1446, %v1446
        %1459 = vst.msk [vmem:[%s287 + $0x5] sm:$0x1] %vm518, %v1425
        %1460 = vst.msk [vmem:[%s287 + $0xd] sm:$0x1] %vm518, %v1439
        %1461 = vst.msk [vmem:[%s287 + $0x15] sm:$0x1] %vm518, %v1447
        %1462 = vst.msk [vmem:[%s287 + $0x1d] sm:$0x1] %vm518, %v1449
        %1463 = vst.msk [vmem:[%s287 + $0x25] sm:$0x1] %vm518, %v1432
        %1464 = vst.msk [vmem:[%s287 + $0x2d] sm:$0x1] %vm518, %v1446
        %1465 = vst.msk [vmem:[%s287 + $0x35] sm:$0x1] %vm518, %v1448
        %1466 = vst.msk [vmem:[%s287 + $0x3d] sm:$0x1] %vm518, %v1450
        %v1467 = vld [vmem:[%s259 + $0xc] sm:$0x1]
        %v1468 = vld [vmem:[%s259 + $0x1c] sm:$0x1]
        %v1469 = vld [vmem:[%s259 + $0x2c] sm:$0x1]
        %v1470 = vld [vmem:[%s259 + $0x3c] sm:$0x1]
        %v1471 = vmul.f32 %v1467, %v303
        %v1472 = vmul.f32 %v1468, %v304
        %v1473 = vmul.f32 %v1469, %v305
        %v1474 = vmul.f32 %v1470, %v306
        %v1475 = vadd.f32 %v1471, %v318
        %v1476 = vadd.f32 %v1472, %v319
        %v1477 = vadd.f32 %v1473, %v320
        %v1478 = vadd.f32 %v1474, %v321
        %v1479 = vmax.f32 %v1475, 0.0
        %v1480 = vmax.f32 %v1476, 0.0
        %v1481 = vmax.f32 %v1477, 0.0
        %v1482 = vmax.f32 %v1478, 0.0
        %v1483 = vpack.c.bf16 %v1479, %v1479
        %v1484 = vpack.c.bf16 %v1480, %v1480
        %v1485 = vpack.c.bf16 %v1481, %v1481
        %v1486 = vpack.c.bf16 %v1482, %v1482
        %v1491 = vunpack.c.l.b16 %v1483
        %v1492 = vunpack.c.l.b16 %v1484
        %v1493 = vunpack.c.l.b16 %v1485
        %v1494 = vunpack.c.l.b16 %v1486
        %v1495 = vrot.slane %v1492, 7
        %v1496 = vsel %vm347, %v1495, %v1491
        %v1497 = vrot.slane %v1493, 6
        %v1498 = vsel %vm350, %v1497, %v1496
        %v1499 = vrot.slane %v1494, 5
        %v1500 = vsel %vm353, %v1499, %v1498
        %v1501 = vpack.c.b16 %v1500, %v1500
        %v1503 = vsel %vm362, %v1501, 0
        %1505 = vmatprep.subr.bf16.mxu0 0
        %1506 = vmatpush1.bf16.msra.mxu0 0
        %1507 = vmatprep.subr.bf16.mxu0 0
        %1508 = vmatpush1.bf16.msra.mxu0 0
        %1509 = vmatprep.subr.bf16.mxu0 0
        %1510 = vmatpush1.bf16.msra.mxu0 0
        %1511 = vmatprep.subr.bf16.mxu0 0
        %1512 = vmatpush1.bf16.msra.mxu0 0
        %1513 = vmatprep.subr.bf16.mxu0 0
        %1514 = vmatpush1.bf16.msra.mxu0 0
        %1515 = vmatprep.subr.bf16.mxu0 0
        %1516 = vmatpush1.bf16.msra.mxu0 0
        %1517 = vmatprep.subr.bf16.mxu0 0
        %1518 = vmatpush1.bf16.msra.mxu0 0
        %1519 = vmatprep.subr.bf16.mxu0 0
        %1520 = vmatpush1.bf16.msra.mxu0 %v360
        %1521 = vmatprep.subr.bf16.mxu0 0
        %1522 = vmatpush2.bf16.msra.mxu0 0
        %1523 = vmatprep.subr.bf16.mxu0 0
        %1524 = vmatpush2.bf16.msra.mxu0 0
        %1525 = vmatprep.subr.bf16.mxu0 0
        %1526 = vmatpush2.bf16.msra.mxu0 0
        %1527 = vmatprep.subr.bf16.mxu0 0
        %1528 = vmatpush2.bf16.msra.mxu0 0
        %1529 = vmatprep.subr.bf16.mxu0 0
        %1530 = vmatpush2.bf16.msra.mxu0 0
        %1531 = vmatprep.subr.bf16.mxu0 0
        %1532 = vmatpush2.bf16.msra.mxu0 0
        %1533 = vmatprep.subr.bf16.mxu0 0
        %1534 = vmatpush2.bf16.msra.mxu0 0
        %1535 = vmatprep.subr.bf16.mxu0 0
        %1536 = vmatpush2.bf16.msra.mxu0 0
        %1537 = vmatprep.mubr.bf16.mxu0 0
        %1538 = vmatmul.mubr.bf16.gmra.mxu0 %v1503
        %v1539 = vpop.f32.mrf.mxu0
        %v1540 = vadd.f32 0.0, %v1539
        %v1541 = vpop.f32.mrf.mxu0
        %v1542 = vpop.f32.mrf.mxu0
        %v1543 = vpop.f32.mrf.mxu0
        %1544 = vdwg.mxu0
        %v1545 = vpack.c.bf16 %v1540, %v1540
        %v1547 = vsel %vm416, %v1545, 0
        %1549 = vmatprep.subr.bf16.mxu0 0
        %1550 = vmatpush1.bf16.msra.mxu0 0
        %1551 = vmatprep.subr.bf16.mxu0 0
        %1552 = vmatpush1.bf16.msra.mxu0 0
        %1553 = vmatprep.subr.bf16.mxu0 0
        %1554 = vmatpush1.bf16.msra.mxu0 0
        %1555 = vmatprep.subr.bf16.mxu0 0
        %1556 = vmatpush1.bf16.msra.mxu0 0
        %1557 = vmatprep.subr.bf16.mxu0 0
        %1558 = vmatpush1.bf16.msra.mxu0 0
        %1559 = vmatprep.subr.bf16.mxu0 0
        %1560 = vmatpush1.bf16.msra.mxu0 0
        %1561 = vmatprep.subr.bf16.mxu0 0
        %1562 = vmatpush1.bf16.msra.mxu0 0
        %1563 = vmatprep.subr.bf16.mxu0 0
        %1564 = vmatpush1.bf16.msra.mxu0 %v1547
        %1565 = vmatprep.subr.bf16.mxu0 0
        %1566 = vmatpush2.bf16.msra.mxu0 0
        %1567 = vmatprep.subr.bf16.mxu0 0
        %1568 = vmatpush2.bf16.msra.mxu0 0
        %1569 = vmatprep.subr.bf16.mxu0 0
        %1570 = vmatpush2.bf16.msra.mxu0 0
        %1571 = vmatprep.subr.bf16.mxu0 0
        %1572 = vmatpush2.bf16.msra.mxu0 0
        %1573 = vmatprep.subr.bf16.mxu0 0
        %1574 = vmatpush2.bf16.msra.mxu0 0
        %1575 = vmatprep.subr.bf16.mxu0 0
        %1576 = vmatpush2.bf16.msra.mxu0 0
        %1577 = vmatprep.subr.bf16.mxu0 0
        %1578 = vmatpush2.bf16.msra.mxu0 0
        %1579 = vmatprep.subr.bf16.mxu0 0
        %1580 = vmatpush2.bf16.msra.mxu0 0
        %1581 = vmatprep.mubr.bf16.mxu0 0
        %1582 = vmatmul.mubr.bf16.gmra.mxu0 %v414
        %v1583 = vpop.f32.mrf.mxu0
        %v1584 = vadd.f32 %v410, %v1583
        %v1585 = vpop.f32.mrf.mxu0
        %v1586 = vpop.f32.mrf.mxu0
        %v1587 = vpop.f32.mrf.mxu0
        %1588 = vdwg.mxu0
        %v1590 = vcombine.high %v1584, %v1584
        %v1592 = vunpack.c.l.s4 1966171168
        %v1593 = vunpack.c.0.s8 %v1592
        %v1594 = vlaneseq
        %v1595 = vshrl.u32 %v1594, 7
        %v1596 = vsub.s32 %v1593, %v1595
        %v1597 = vrot.slane %v1584, %v1596
        %v1599 = vunpack.c.l.s4 1966171168
        %v1600 = vunpack.c.0.s8 %v1599
        %v1601 = vlaneseq
        %v1602 = vshrl.u32 %v1601, 7
        %v1603 = vsub.s32 %v1600, %v1602
        %v1604 = vrot.slane %v1590, %v1603
        %v1605 = vcombine.high %v1597, %v1597
        %v1606 = vcombine.high %v1604, %v1604
        %v1608 = vunpack.c.l.s4 1966171168
        %v1609 = vunpack.c.0.s8 %v1608
        %v1610 = vlaneseq
        %v1611 = vshrl.u32 %v1610, 7
        %v1612 = vsub.s32 %v1609, %v1611
        %v1613 = vrot.slane %v1597, %v1612
        %v1615 = vunpack.c.l.s4 1966171168
        %v1616 = vunpack.c.0.s8 %v1615
        %v1617 = vlaneseq
        %v1618 = vshrl.u32 %v1617, 7
        %v1619 = vsub.s32 %v1616, %v1618
        %v1620 = vrot.slane %v1604, %v1619
        %v1622 = vunpack.c.l.s4 1966171168
        %v1623 = vunpack.c.0.s8 %v1622
        %v1624 = vlaneseq
        %v1625 = vshrl.u32 %v1624, 7
        %v1626 = vsub.s32 %v1623, %v1625
        %v1627 = vrot.slane %v1605, %v1626
        %v1629 = vunpack.c.l.s4 1966171168
        %v1630 = vunpack.c.0.s8 %v1629
        %v1631 = vlaneseq
        %v1632 = vshrl.u32 %v1631, 7
        %v1633 = vsub.s32 %v1630, %v1632
        %v1634 = vrot.slane %v1606, %v1633
        %v1635 = vcombine.high %v1613, %v1613
        %v1636 = vcombine.high %v1620, %v1620
        %v1637 = vcombine.high %v1627, %v1627
        %v1638 = vcombine.high %v1634, %v1634
        %1647 = vst.msk [vmem:[%s287 + $0x6] sm:$0x1] %vm518, %v1613
        %1648 = vst.msk [vmem:[%s287 + $0xe] sm:$0x1] %vm518, %v1627
        %1649 = vst.msk [vmem:[%s287 + $0x16] sm:$0x1] %vm518, %v1635
        %1650 = vst.msk [vmem:[%s287 + $0x1e] sm:$0x1] %vm518, %v1637
        %1651 = vst.msk [vmem:[%s287 + $0x26] sm:$0x1] %vm518, %v1620
        %1652 = vst.msk [vmem:[%s287 + $0x2e] sm:$0x1] %vm518, %v1634
        %1653 = vst.msk [vmem:[%s287 + $0x36] sm:$0x1] %vm518, %v1636
        %1654 = vst.msk [vmem:[%s287 + $0x3e] sm:$0x1] %vm518, %v1638
        %v1655 = vld [vmem:[%s259 + $0xe] sm:$0x1]
        %v1656 = vld [vmem:[%s259 + $0x1e] sm:$0x1]
        %v1657 = vld [vmem:[%s259 + $0x2e] sm:$0x1]
        %v1658 = vld [vmem:[%s259 + $0x3e] sm:$0x1]
        %v1659 = vmul.f32 %v1655, %v303
        %v1660 = vmul.f32 %v1656, %v304
        %v1661 = vmul.f32 %v1657, %v305
        %v1662 = vmul.f32 %v1658, %v306
        %v1663 = vadd.f32 %v1659, %v318
        %v1664 = vadd.f32 %v1660, %v319
        %v1665 = vadd.f32 %v1661, %v320
        %v1666 = vadd.f32 %v1662, %v321
        %v1667 = vmax.f32 %v1663, 0.0
        %v1668 = vmax.f32 %v1664, 0.0
        %v1669 = vmax.f32 %v1665, 0.0
        %v1670 = vmax.f32 %v1666, 0.0
        %v1671 = vpack.c.bf16 %v1667, %v1667
        %v1672 = vpack.c.bf16 %v1668, %v1668
        %v1673 = vpack.c.bf16 %v1669, %v1669
        %v1674 = vpack.c.bf16 %v1670, %v1670
        %v1679 = vunpack.c.l.b16 %v1671
        %v1680 = vunpack.c.l.b16 %v1672
        %v1681 = vunpack.c.l.b16 %v1673
        %v1682 = vunpack.c.l.b16 %v1674
        %v1683 = vrot.slane %v1680, 7
        %v1684 = vsel %vm347, %v1683, %v1679
        %v1685 = vrot.slane %v1681, 6
        %v1686 = vsel %vm350, %v1685, %v1684
        %v1687 = vrot.slane %v1682, 5
        %v1688 = vsel %vm353, %v1687, %v1686
        %v1689 = vpack.c.b16 %v1688, %v1688
        %v1691 = vsel %vm362, %v1689, 0
        %1693 = vmatprep.subr.bf16.mxu0 0
        %1694 = vmatpush1.bf16.msra.mxu0 0
        %1695 = vmatprep.subr.bf16.mxu0 0
        %1696 = vmatpush1.bf16.msra.mxu0 0
        %1697 = vmatprep.subr.bf16.mxu0 0
        %1698 = vmatpush1.bf16.msra.mxu0 0
        %1699 = vmatprep.subr.bf16.mxu0 0
        %1700 = vmatpush1.bf16.msra.mxu0 0
        %1701 = vmatprep.subr.bf16.mxu0 0
        %1702 = vmatpush1.bf16.msra.mxu0 0
        %1703 = vmatprep.subr.bf16.mxu0 0
        %1704 = vmatpush1.bf16.msra.mxu0 0
        %1705 = vmatprep.subr.bf16.mxu0 0
        %1706 = vmatpush1.bf16.msra.mxu0 0
        %1707 = vmatprep.subr.bf16.mxu0 0
        %1708 = vmatpush1.bf16.msra.mxu0 %v360
        %1709 = vmatprep.subr.bf16.mxu0 0
        %1710 = vmatpush2.bf16.msra.mxu0 0
        %1711 = vmatprep.subr.bf16.mxu0 0
        %1712 = vmatpush2.bf16.msra.mxu0 0
        %1713 = vmatprep.subr.bf16.mxu0 0
        %1714 = vmatpush2.bf16.msra.mxu0 0
        %1715 = vmatprep.subr.bf16.mxu0 0
        %1716 = vmatpush2.bf16.msra.mxu0 0
        %1717 = vmatprep.subr.bf16.mxu0 0
        %1718 = vmatpush2.bf16.msra.mxu0 0
        %1719 = vmatprep.subr.bf16.mxu0 0
        %1720 = vmatpush2.bf16.msra.mxu0 0
        %1721 = vmatprep.subr.bf16.mxu0 0
        %1722 = vmatpush2.bf16.msra.mxu0 0
        %1723 = vmatprep.subr.bf16.mxu0 0
        %1724 = vmatpush2.bf16.msra.mxu0 0
        %1725 = vmatprep.mubr.bf16.mxu0 0
        %1726 = vmatmul.mubr.bf16.gmra.mxu0 %v1691
        %v1727 = vpop.f32.mrf.mxu0
        %v1728 = vadd.f32 0.0, %v1727
        %v1729 = vpop.f32.mrf.mxu0
        %v1730 = vpop.f32.mrf.mxu0
        %v1731 = vpop.f32.mrf.mxu0
        %1732 = vdwg.mxu0
        %v1733 = vpack.c.bf16 %v1728, %v1728
        %v1735 = vsel %vm416, %v1733, 0
        %1737 = vmatprep.subr.bf16.mxu0 0
        %1738 = vmatpush1.bf16.msra.mxu0 0
        %1739 = vmatprep.subr.bf16.mxu0 0
        %1740 = vmatpush1.bf16.msra.mxu0 0
        %1741 = vmatprep.subr.bf16.mxu0 0
        %1742 = vmatpush1.bf16.msra.mxu0 0
        %1743 = vmatprep.subr.bf16.mxu0 0
        %1744 = vmatpush1.bf16.msra.mxu0 0
        %1745 = vmatprep.subr.bf16.mxu0 0
        %1746 = vmatpush1.bf16.msra.mxu0 0
        %1747 = vmatprep.subr.bf16.mxu0 0
        %1748 = vmatpush1.bf16.msra.mxu0 0
        %1749 = vmatprep.subr.bf16.mxu0 0
        %1750 = vmatpush1.bf16.msra.mxu0 0
        %1751 = vmatprep.subr.bf16.mxu0 0
        %1752 = vmatpush1.bf16.msra.mxu0 %v1735
        %1753 = vmatprep.subr.bf16.mxu0 0
        %1754 = vmatpush2.bf16.msra.mxu0 0
        %1755 = vmatprep.subr.bf16.mxu0 0
        %1756 = vmatpush2.bf16.msra.mxu0 0
        %1757 = vmatprep.subr.bf16.mxu0 0
        %1758 = vmatpush2.bf16.msra.mxu0 0
        %1759 = vmatprep.subr.bf16.mxu0 0
        %1760 = vmatpush2.bf16.msra.mxu0 0
        %1761 = vmatprep.subr.bf16.mxu0 0
        %1762 = vmatpush2.bf16.msra.mxu0 0
        %1763 = vmatprep.subr.bf16.mxu0 0
        %1764 = vmatpush2.bf16.msra.mxu0 0
        %1765 = vmatprep.subr.bf16.mxu0 0
        %1766 = vmatpush2.bf16.msra.mxu0 0
        %1767 = vmatprep.subr.bf16.mxu0 0
        %1768 = vmatpush2.bf16.msra.mxu0 0
        %1769 = vmatprep.mubr.bf16.mxu0 0
        %1770 = vmatmul.mubr.bf16.gmra.mxu0 %v414
        %v1771 = vpop.f32.mrf.mxu0
        %v1772 = vadd.f32 %v410, %v1771
        %v1773 = vpop.f32.mrf.mxu0
        %v1774 = vpop.f32.mrf.mxu0
        %v1775 = vpop.f32.mrf.mxu0
        %1776 = vdwg.mxu0
        %v1778 = vcombine.high %v1772, %v1772
        %v1780 = vunpack.c.l.s4 1966171168
        %v1781 = vunpack.c.0.s8 %v1780
        %v1782 = vlaneseq
        %v1783 = vshrl.u32 %v1782, 7
        %v1784 = vsub.s32 %v1781, %v1783
        %v1785 = vrot.slane %v1772, %v1784
        %v1787 = vunpack.c.l.s4 1966171168
        %v1788 = vunpack.c.0.s8 %v1787
        %v1789 = vlaneseq
        %v1790 = vshrl.u32 %v1789, 7
        %v1791 = vsub.s32 %v1788, %v1790
        %v1792 = vrot.slane %v1778, %v1791
        %v1793 = vcombine.high %v1785, %v1785
        %v1794 = vcombine.high %v1792, %v1792
        %v1796 = vunpack.c.l.s4 1966171168
        %v1797 = vunpack.c.0.s8 %v1796
        %v1798 = vlaneseq
        %v1799 = vshrl.u32 %v1798, 7
        %v1800 = vsub.s32 %v1797, %v1799
        %v1801 = vrot.slane %v1785, %v1800
        %v1803 = vunpack.c.l.s4 1966171168
        %v1804 = vunpack.c.0.s8 %v1803
        %v1805 = vlaneseq
        %v1806 = vshrl.u32 %v1805, 7
        %v1807 = vsub.s32 %v1804, %v1806
        %v1808 = vrot.slane %v1792, %v1807
        %v1810 = vunpack.c.l.s4 1966171168
        %v1811 = vunpack.c.0.s8 %v1810
        %v1812 = vlaneseq
        %v1813 = vshrl.u32 %v1812, 7
        %v1814 = vsub.s32 %v1811, %v1813
        %v1815 = vrot.slane %v1793, %v1814
        %v1817 = vunpack.c.l.s4 1966171168
        %v1818 = vunpack.c.0.s8 %v1817
        %v1819 = vlaneseq
        %v1820 = vshrl.u32 %v1819, 7
        %v1821 = vsub.s32 %v1818, %v1820
        %v1822 = vrot.slane %v1794, %v1821
        %v1823 = vcombine.high %v1801, %v1801
        %v1824 = vcombine.high %v1808, %v1808
        %v1825 = vcombine.high %v1815, %v1815
        %v1826 = vcombine.high %v1822, %v1822
        %1835 = vst.msk [vmem:[%s287 + $0x7] sm:$0x1] %vm518, %v1801
        %1836 = vst.msk [vmem:[%s287 + $0xf] sm:$0x1] %vm518, %v1815
        %1837 = vst.msk [vmem:[%s287 + $0x17] sm:$0x1] %vm518, %v1823
        %1838 = vst.msk [vmem:[%s287 + $0x1f] sm:$0x1] %vm518, %v1825
        %1839 = vst.msk [vmem:[%s287 + $0x27] sm:$0x1] %vm518, %v1808
        %1840 = vst.msk [vmem:[%s287 + $0x2f] sm:$0x1] %vm518, %v1822
        %1841 = vst.msk [vmem:[%s287 + $0x37] sm:$0x1] %vm518, %v1824
        %1842 = vst.msk [vmem:[%s287 + $0x3f] sm:$0x1] %vm518, %v1826
        %s1843 = sand.u32 %s178, 1
        %s1844 = scalar_lea.sflag [#allocation4], %s1843
        %s1845 = sand.u32 %s178, 1
        %s1846 = smul.addr %s1845, 64
        %s1847 = scalar_lea.vmem [#allocation5], %s1846
        // Predicated region
        $region49: #{tpu_custom_call.1} parent=43 // pred_check
          %p1848 = pneg %p188
        $region50: #{tpu_custom_call.1} parent=43 // pred_check_branch
          %1850 = sbr.rel (%p1848) target = $region52
        $region51: #{tpu_custom_call.1} parent=43 // pred_region
          %s1852 = ssub.s32 1024, 1024
          %1853 = vsyncadd %s1844, %s1852
          %s1854 = smul.addr %s27, 8
          %s1855 = sadd.s32 %s28, %s1854
          %s1856 = smul.addr %s1855, 128
          %s1857 = scalar_lea.hbm %s6, %s1856
          %s1858 = sshll.u32 %s1847, 4
          %s1859 = int_to_ptr.vmem [resolvable:$true] %s1858
          %1864 = dma.vmem_to_hbm [thread:$0]  %s1859, 1024, %s1857, %s1844, 128, 128, 8
        $region52: #{tpu_custom_call.1} parent=43 // pred_fallthru
          _
      $region44: #{tpu_custom_call.1} parent=5 // pred_fallthru
        _
      %p1865 = scmp.le.s32.totalorder 2, %s18
      // Predicated region
      $region53: #{tpu_custom_call.1} parent=5 // pred_check
        %p1866 = pneg %p1865
      $region54: #{tpu_custom_call.1} parent=5 // pred_check_branch
        %1868 = sbr.rel (%p1866) target = $region56
      $region55: #{tpu_custom_call.1} parent=5 // pred_region
        %s1869 = ssub.s32 %s18, 2
        // Predicated region
        $region57: #{tpu_custom_call.1} parent=55 // pred_check
          %p1870 = pneg %p194
        $region58: #{tpu_custom_call.1} parent=55 // pred_check_branch
          %1872 = sbr.rel (%p1870) target = $region60
        $region59: #{tpu_custom_call.1} parent=55 // pred_region
          %s1873 = sand.u32 %s179, 1
          %s1874 = scalar_lea.sflag [#allocation4], %s1873
          %s1875 = sand.u32 %s179, 1
          %s1876 = smul.addr %s1875, 64
          %s1877 = scalar_lea.vmem [#allocation5], %s1876
          %1878 = dma.done %s1874, 1024
        $region60: #{tpu_custom_call.1} parent=55 // pred_fallthru
          _
      $region56: #{tpu_custom_call.1} parent=5 // pred_fallthru
        _
    $region6: #{tpu_custom_call.1} parent=1 // loop_footer
      %s22 = sadd.s32 1, %s18
    $region7: #{tpu_custom_call.1} parent=1 // loop_footer_branch
      %17 = sbr.rel target = $region3
    $region8: #{tpu_custom_call.1} parent=1 // loop_exit
      _
    %1879 = vsyncpa [#allocation3], 1
    %s1880 = scalar_lea.sflag [#allocation3], 1
    %1881 = vsyncpa %s1880, 1
    %1882 = vsyncpa [#allocation4], 1
    %s1883 = scalar_lea.sflag [#allocation4], 1
    %1884 = vsyncpa %s1883, 1

</llo_original>
